<compile_context>
chip_gen: v5e
topology: v5e:2x2
jax: 0.10.0
libtpu: 0.0.40
codegen_flags: <defaults>
</compile_context>

<pallas_src>
import functools

import jax
import jax.numpy as jnp
from jax.experimental import pallas as pl
from jax.experimental.pallas import tpu as pltpu


def _layer_norm_f32(x, gamma, beta, eps=1e-6):
    """LayerNorm with statistics in f32 (PyTorch nn.LayerNorm semantics, eps=1e-6)."""
    xf = x.astype(jnp.float32)
    mean = jnp.mean(xf, axis=-1, keepdims=True)
    var = jnp.mean(jnp.square(xf - mean), axis=-1, keepdims=True)
    return ((xf - mean) * jax.lax.rsqrt(var + eps)
            * gamma.astype(jnp.float32) + beta.astype(jnp.float32))


def encoder_layer_kernel(x_ref, mask_ref,
                         wqkv_ref, bqkv_ref, wo_ref, bo_ref,
                         ln1_g_ref, ln1_b_ref,
                         ln2_g_ref, ln2_b_ref,
                         w1_ref, b1_ref, w2_ref, b2_ref,
                         o_ref, *, heads):
    """Whole encoder layer for one batch element (grid axis = batch)."""
    cdt = x_ref.dtype                     # compute/storage dtype (f32 or bf16)
    x = x_ref[0]                          # (S, D)
    S, D = x.shape
    dh = D // heads
    scale = 1.0 / float(dh) ** 0.5

    xf = x.astype(jnp.float32)

    # ---- pre-attention LayerNorm (f32 stats) ------------------------------
    xn = _layer_norm_f32(xf, ln1_g_ref[0], ln1_b_ref[0])

    # ---- fused QKV projection: one (S,D)x(D,3D) MXU matmul ----------------
    qkv = jnp.dot(xn.astype(cdt), wqkv_ref[...],
                  preferred_element_type=jnp.float32)
    qkv = qkv + bqkv_ref[0].astype(jnp.float32)            # (S, 3D) f32
    q = (qkv[:, 0:D] * scale).astype(cdt)                  # scale folded into Q once
    k = qkv[:, D:2 * D].astype(cdt)
    v = qkv[:, 2 * D:3 * D].astype(cdt)

    # ---- additive key-mask bias, hoisted out of the head loop -------------
    neg_bias = jnp.where(mask_ref[0] > 0,
                         jnp.float32(-1e18), jnp.float32(0.0))   # (1, S)

    # ---- per-head scaled-dot-product attention ----------------------------
    ctx_parts = []
    for h in range(heads):                                 # static unroll; heads is small
        sl = slice(h * dh, (h + 1) * dh)
        qh, kh, vh = q[:, sl], k[:, sl], v[:, sl]
        # contract on the last dims directly — no explicit kh.T (no XLU transpose)
        scores = jax.lax.dot_general(qh, kh, (((1,), (1,)), ((), ())),
                                     preferred_element_type=jnp.float32)  # (S, S)
        scores = scores + neg_bias
        smax = jnp.max(scores, axis=-1, keepdims=True)
        e = jnp.exp(scores - smax)                         # f32
        l = jnp.sum(e, axis=-1, keepdims=True)             # (S, 1) f32
        # normalize AFTER the PV matmul: EUP reciprocal + (S,dh) multiplies
        ctx_h = jnp.dot(e.astype(cdt), vh, preferred_element_type=jnp.float32)
        ctx_parts.append(ctx_h * pl.reciprocal(l, approx=True))
    ctx = jnp.concatenate(ctx_parts, axis=-1)              # (S, D) f32, heads on lanes

    # ---- single full-width output projection ------------------------------
    context = jnp.dot(ctx.astype(cdt), wo_ref[...],
                      preferred_element_type=jnp.float32)
    context = context + bo_ref[0].astype(jnp.float32)

    # ---- residual (dropout is identity at inference) ----------------------
    out1 = context + xf                                    # (S, D) f32

    # ---- position-wise feed-forward (own LayerNorm + residual) ------------
    yn = _layer_norm_f32(out1, ln2_g_ref[0], ln2_b_ref[0])
    h1 = jnp.dot(yn.astype(cdt), w1_ref[...],
                 preferred_element_type=jnp.float32) + b1_ref[0].astype(jnp.float32)
    h1 = jnp.maximum(h1, 0.0)                              # ReLU
    y = jnp.dot(h1.astype(cdt), w2_ref[...],
                preferred_element_type=jnp.float32) + b2_ref[0].astype(jnp.float32)
    o_ref[0] = (y + out1).astype(o_ref.dtype)


def transformer_encoder_layer(x, mask, params, heads, *, vmem_limit_bytes=None):
    """x: (B,S,D); mask: (B,1,S) int32 (1 == pad); params in the same dtype as x."""
    B, S, D = x.shape
    d_ff = params["w1"].shape[1]
    assert D % heads == 0, "d_model must be divisible by heads"

    # Fuse Q/K/V into a single (D, 3D) weight / (1, 3D) bias at wrapper level.
    wqkv = jnp.concatenate([params["wq"], params["wk"], params["wv"]], axis=1)
    bqkv = jnp.concatenate([params["bq"], params["bk"], params["bv"]], axis=1)

    operands = [
        wqkv, bqkv,
        params["wo"], params["bo"],
        params["ln1_g"], params["ln1_b"],
        params["ln2_g"], params["ln2_b"],
        params["w1"], params["b1"],
        params["w2"], params["b2"],
    ]

    def full(a):
        shape = a.shape
        return pl.BlockSpec(shape, lambda b, _s=shape: (0,) * len(_s))

    in_specs = [
        pl.BlockSpec((1, S, D), lambda b: (b, 0, 0)),   # x: one batch row per grid step
        pl.BlockSpec((1, 1, S), lambda b: (b, 0, 0)),   # mask
    ] + [full(a) for a in operands]                     # weights: constant index maps

    if vmem_limit_bytes is None:
        weight_bytes = sum(int(a.size) * int(a.dtype.itemsize) for a in operands)
        act_bytes = 8 * S * max(3 * D, d_ff) * 4                     # f32 intermediates (rough)
        io_bytes = 2 * S * D * int(jnp.dtype(x.dtype).itemsize) + 4 * S
        vmem_limit_bytes = max(2 * (weight_bytes + io_bytes) + act_bytes,
                               32 * 1024 * 1024)

    kernel = functools.partial(encoder_layer_kernel, heads=heads)
    return pl.pallas_call(
        kernel,
        out_shape=jax.ShapeDtypeStruct((B, S, D), x.dtype),
        grid=(B,),
        in_specs=in_specs,
        out_specs=pl.BlockSpec((1, S, D), lambda b: (b, 0, 0)),
        compiler_params=pltpu.CompilerParams(
            dimension_semantics=("parallel",),
            vmem_limit_bytes=int(vmem_limit_bytes)),
    )(x, mask, *operands)


# ---------------------------- pure-JAX reference ---------------------------
def reference(x, mask, params, heads):
    B, S, D = x.shape
    dh = D // heads

    def ln(v, g, b):
        mu = v.mean(-1, keepdims=True)
        var = ((v - mu) ** 2).mean(-1, keepdims=True)
        return (v - mu) / jnp.sqrt(var + 1e-6) * g + b

    xn = ln(x, params["ln1_g"][0], params["ln1_b"][0])
    q = xn @ params["wq"] + params["bq"][0]
    k = xn @ params["wk"] + params["bk"][0]
    v = xn @ params["wv"] + params["bv"][0]
    q = q.reshape(B, S, heads, dh).transpose(0, 2, 1, 3) / jnp.sqrt(jnp.float32(dh))
    k = k.reshape(B, S, heads, dh).transpose(0, 2, 1, 3)
    v = v.reshape(B, S, heads, dh).transpose(0, 2, 1, 3)
    scores = jnp.einsum("bhqd,bhkd->bhqk", q, k)
    scores = jnp.where(mask[:, None, :, :] > 0, -1e18, scores)
    p = jax.nn.softmax(scores, axis=-1)
    ctx = jnp.einsum("bhqk,bhkd->bhqd", p, v).transpose(0, 2, 1, 3).reshape(B, S, D)
    context = ctx @ params["wo"] + params["bo"][0]
    out1 = context + x
    yn = ln(out1, params["ln2_g"][0], params["ln2_b"][0])
    h1 = jax.nn.relu(yn @ params["w1"] + params["b1"][0])
    return h1 @ params["w2"] + params["b2"][0] + out1


if __name__ == "__main__":
    # Small but TPU-friendly shapes: D is lane-dense (128), S a sublane multiple.
    B, S, D, H, DFF = 4, 16, 128, 4, 256

    key = jax.random.PRNGKey(0)
    ks = jax.random.split(key, 16)

    def w(k, shape):
        return (jax.random.normal(k, shape, jnp.float32) * 0.02).astype(jnp.float32)

    params = {
        "wq": w(ks[0], (D, D)), "bq": w(ks[1], (1, D)),
        "wk": w(ks[2], (D, D)), "bk": w(ks[3], (1, D)),
        "wv": w(ks[4], (D, D)), "bv": w(ks[5], (1, D)),
        "wo": w(ks[6], (D, D)), "bo": w(ks[7], (1, D)),
        "ln1_g": jnp.ones((1, D), jnp.float32), "ln1_b": jnp.zeros((1, D), jnp.float32),
        "ln2_g": jnp.ones((1, D), jnp.float32), "ln2_b": jnp.zeros((1, D), jnp.float32),
        "w1": w(ks[8], (D, DFF)), "b1": w(ks[9], (1, DFF)),
        "w2": w(ks[10], (DFF, D)), "b2": w(ks[11], (1, D)),
    }

    x = jax.random.normal(ks[12], (B, S, D), jnp.float32)
    lengths = jnp.array([S, 11, 7, S], jnp.int32)              # some sequences are padded
    pos = jnp.arange(S, dtype=jnp.int32)[None, None, :]
    mask = (pos >= lengths[:, None, None]).astype(jnp.int32)   # (B, 1, S), 1 == pad

    # ---- f32 run: tight check vs pure-JAX reference ------------------------
    out_f32 = jax.block_until_ready(transformer_encoder_layer(x, mask, params, heads=H))
    ref_f32 = reference(x, mask, params, heads=H)
    assert out_f32.shape == (B, S, D)
    assert jnp.allclose(out_f32, ref_f32, rtol=2e-3, atol=2e-3), "f32 mismatch vs reference"

    # ---- bf16 storage run: halves HBM/VMEM traffic; accumulations stay f32 --
    params_bf16 = jax.tree_util.tree_map(lambda a: a.astype(jnp.bfloat16), params)
    x_bf16 = x.astype(jnp.bfloat16)
    out_bf16 = jax.block_until_ready(
        transformer_encoder_layer(x_bf16, mask, params_bf16, heads=H))
    params_rt = jax.tree_util.tree_map(lambda a: a.astype(jnp.float32), params_bf16)
    ref_bf16 = reference(x_bf16.astype(jnp.float32), mask, params_rt, heads=H)
    assert out_bf16.shape == (B, S, D)
    assert jnp.allclose(out_bf16.astype(jnp.float32), ref_bf16,
                        rtol=5e-2, atol=5e-2), "bf16 mismatch vs reference"

    print("KERNEL_OK")
</pallas_src>

<mosaic_0001>
module attributes {stable_mosaic.version = 11 : i64} {
  func.func @encoder_layer_kernel(%arg0: i32, %arg1: memref<1x16x128xf32, #tpu.memory_space<vmem>>, %arg2: memref<1x1x16xi32, #tpu.memory_space<vmem>>, %arg3: memref<128x384xf32, #tpu.memory_space<vmem>>, %arg4: memref<1x384xf32, #tpu.memory_space<vmem>>, %arg5: memref<128x128xf32, #tpu.memory_space<vmem>>, %arg6: memref<1x128xf32, #tpu.memory_space<vmem>>, %arg7: memref<1x128xf32, #tpu.memory_space<vmem>>, %arg8: memref<1x128xf32, #tpu.memory_space<vmem>>, %arg9: memref<1x128xf32, #tpu.memory_space<vmem>>, %arg10: memref<1x128xf32, #tpu.memory_space<vmem>>, %arg11: memref<128x256xf32, #tpu.memory_space<vmem>>, %arg12: memref<1x256xf32, #tpu.memory_space<vmem>>, %arg13: memref<256x128xf32, #tpu.memory_space<vmem>>, %arg14: memref<1x128xf32, #tpu.memory_space<vmem>>, %arg15: memref<1x16x128xf32, #tpu.memory_space<vmem>>) attributes {dimension_semantics = [#tpu.dimension_semantics<parallel>], iteration_bounds = array<i64: 4>, scalar_prefetch = 0 : i64, scratch_operands = 0 : i64, tpu.core_type = #tpu.core_type<tc>, window_params = [{transform_indices = @transform_0, window_bounds = array<i64: 1, 16, 128>}, {transform_indices = @transform_1, window_bounds = array<i64: 1, 1, 16>}, {pipeline_mode = #tpu.pipeline_mode<synchronous>, transform_indices = @transform_2, window_bounds = array<i64: 128, 384>}, {pipeline_mode = #tpu.pipeline_mode<synchronous>, transform_indices = @transform_3, window_bounds = array<i64: 1, 384>}, {pipeline_mode = #tpu.pipeline_mode<synchronous>, transform_indices = @transform_4, window_bounds = array<i64: 128, 128>}, {pipeline_mode = #tpu.pipeline_mode<synchronous>, transform_indices = @transform_5, window_bounds = array<i64: 1, 128>}, {pipeline_mode = #tpu.pipeline_mode<synchronous>, transform_indices = @transform_6, window_bounds = array<i64: 1, 128>}, {pipeline_mode = #tpu.pipeline_mode<synchronous>, transform_indices = @transform_7, window_bounds = array<i64: 1, 128>}, {pipeline_mode = #tpu.pipeline_mode<synchronous>, transform_indices = @transform_8, window_bounds = array<i64: 1, 128>}, {pipeline_mode = #tpu.pipeline_mode<synchronous>, transform_indices = @transform_9, window_bounds = array<i64: 1, 128>}, {pipeline_mode = #tpu.pipeline_mode<synchronous>, transform_indices = @transform_10, window_bounds = array<i64: 128, 256>}, {pipeline_mode = #tpu.pipeline_mode<synchronous>, transform_indices = @transform_11, window_bounds = array<i64: 1, 256>}, {pipeline_mode = #tpu.pipeline_mode<synchronous>, transform_indices = @transform_12, window_bounds = array<i64: 256, 128>}, {pipeline_mode = #tpu.pipeline_mode<synchronous>, transform_indices = @transform_13, window_bounds = array<i64: 1, 128>}, {transform_indices = @transform_14, window_bounds = array<i64: 1, 16, 128>}]} {
    %c0 = arith.constant 0 : index
    %c0_0 = arith.constant 0 : index
    %c0_1 = arith.constant 0 : index
    %0 = vector.load %arg1[%c0, %c0_0, %c0_1] : memref<1x16x128xf32, #tpu.memory_space<vmem>>, vector<1x16x128xf32>
    %1 = vector.shape_cast %0 : vector<1x16x128xf32> to vector<16x128xf32>
    %c0_2 = arith.constant 0 : index
    %c0_3 = arith.constant 0 : index
    %2 = vector.load %arg7[%c0_2, %c0_3] : memref<1x128xf32, #tpu.memory_space<vmem>>, vector<1x128xf32>
    %3 = vector.shape_cast %2 : vector<1x128xf32> to vector<128xf32>
    %c0_4 = arith.constant 0 : index
    %c0_5 = arith.constant 0 : index
    %4 = vector.load %arg8[%c0_4, %c0_5] : memref<1x128xf32, #tpu.memory_space<vmem>>, vector<1x128xf32>
    %5 = vector.shape_cast %4 : vector<1x128xf32> to vector<128xf32>
    %cst = arith.constant dense<0.000000e+00> : vector<16xf32>
    %6 = vector.multi_reduction <add>, %1, %cst [1] : vector<16x128xf32> to vector<16xf32>
    %7 = vector.shape_cast %6 : vector<16xf32> to vector<16x1xf32>
    %cst_6 = arith.constant 1.280000e+02 : f32
    %8 = vector.broadcast %cst_6 : f32 to vector<16x1xf32>
    %9 = arith.divf %7, %8 : vector<16x1xf32>
    %10 = vector.broadcast %9 : vector<16x1xf32> to vector<16x128xf32>
    %11 = arith.subf %1, %10 : vector<16x128xf32>
    %12 = arith.mulf %11, %11 : vector<16x128xf32>
    %cst_7 = arith.constant dense<0.000000e+00> : vector<16xf32>
    %13 = vector.multi_reduction <add>, %12, %cst_7 [1] : vector<16x128xf32> to vector<16xf32>
    %14 = vector.shape_cast %13 : vector<16xf32> to vector<16x1xf32>
    %cst_8 = arith.constant 1.280000e+02 : f32
    %15 = vector.broadcast %cst_8 : f32 to vector<16x1xf32>
    %16 = arith.divf %14, %15 : vector<16x1xf32>
    %17 = vector.broadcast %9 : vector<16x1xf32> to vector<16x128xf32>
    %18 = arith.subf %1, %17 : vector<16x128xf32>
    %cst_9 = arith.constant 9.99999997E-7 : f32
    %19 = vector.broadcast %cst_9 : f32 to vector<16x1xf32>
    %20 = arith.addf %16, %19 : vector<16x1xf32>
    %21 = math.rsqrt %20 : vector<16x1xf32>
    %22 = vector.broadcast %21 : vector<16x1xf32> to vector<16x128xf32>
    %23 = arith.mulf %18, %22 : vector<16x128xf32>
    %24 = vector.shape_cast %3 : vector<128xf32> to vector<1x128xf32>
    %25 = vector.broadcast %24 : vector<1x128xf32> to vector<16x128xf32>
    %26 = arith.mulf %23, %25 : vector<16x128xf32>
    %27 = vector.shape_cast %5 : vector<128xf32> to vector<1x128xf32>
    %28 = vector.broadcast %27 : vector<1x128xf32> to vector<16x128xf32>
    %29 = arith.addf %26, %28 : vector<16x128xf32>
    %c0_10 = arith.constant 0 : index
    %c0_11 = arith.constant 0 : index
    %30 = vector.load %arg3[%c0_10, %c0_11] : memref<128x384xf32, #tpu.memory_space<vmem>>, vector<128x384xf32>
    %cst_12 = arith.constant dense<0.000000e+00> : vector<16x384xf32>
    %31 = tpu.matmul %29, %30, %cst_12 {dimension_numbers = #tpu.dot_dimension_numbers<[1], [0], [0], [1], [0, 0, 1, 1], [], []>} : vector<16x128xf32>, vector<128x384xf32>, vector<16x384xf32> -> vector<16x384xf32>
    %c0_13 = arith.constant 0 : index
    %c0_14 = arith.constant 0 : index
    %32 = vector.load %arg4[%c0_13, %c0_14] : memref<1x384xf32, #tpu.memory_space<vmem>>, vector<1x384xf32>
    %33 = vector.shape_cast %32 : vector<1x384xf32> to vector<384xf32>
    %34 = vector.shape_cast %33 : vector<384xf32> to vector<1x384xf32>
    %35 = vector.broadcast %34 : vector<1x384xf32> to vector<16x384xf32>
    %36 = arith.addf %31, %35 : vector<16x384xf32>
    %37 = vector.extract_strided_slice %36 {offsets = [0, 0], sizes = [16, 128], strides = [1, 1]} : vector<16x384xf32> to vector<16x128xf32>
    %cst_15 = arith.constant 0.176776692 : f32
    %38 = vector.broadcast %cst_15 : f32 to vector<16x128xf32>
    %39 = arith.mulf %37, %38 : vector<16x128xf32>
    %40 = vector.extract_strided_slice %36 {offsets = [0, 128], sizes = [16, 128], strides = [1, 1]} : vector<16x384xf32> to vector<16x128xf32>
    %41 = vector.extract_strided_slice %36 {offsets = [0, 256], sizes = [16, 128], strides = [1, 1]} : vector<16x384xf32> to vector<16x128xf32>
    %c0_16 = arith.constant 0 : index
    %c0_17 = arith.constant 0 : index
    %c0_18 = arith.constant 0 : index
    %42 = vector.load %arg2[%c0_16, %c0_17, %c0_18] : memref<1x1x16xi32, #tpu.memory_space<vmem>>, vector<1x1x16xi32>
    %43 = vector.shape_cast %42 : vector<1x1x16xi32> to vector<1x16xi32>
    %c0_i32 = arith.constant 0 : i32
    %44 = vector.broadcast %c0_i32 : i32 to vector<1x16xi32>
    %45 = arith.cmpi sgt, %43, %44 : vector<1x16xi32>
    %cst_19 = arith.constant -9.99999984E+17 : f32
    %cst_20 = arith.constant 0.000000e+00 : f32
    %46 = vector.broadcast %cst_19 : f32 to vector<1x16xf32>
    %47 = vector.broadcast %cst_20 : f32 to vector<1x16xf32>
    %48 = arith.select %45, %46, %47 : vector<1x16xi1>, vector<1x16xf32>
    %49 = vector.extract_strided_slice %39 {offsets = [0, 0], sizes = [16, 32], strides = [1, 1]} : vector<16x128xf32> to vector<16x32xf32>
    %50 = vector.extract_strided_slice %40 {offsets = [0, 0], sizes = [16, 32], strides = [1, 1]} : vector<16x128xf32> to vector<16x32xf32>
    %51 = vector.extract_strided_slice %41 {offsets = [0, 0], sizes = [16, 32], strides = [1, 1]} : vector<16x128xf32> to vector<16x32xf32>
    %cst_21 = arith.constant dense<0.000000e+00> : vector<16x16xf32>
    %52 = tpu.matmul %49, %50, %cst_21 {dimension_numbers = #tpu.dot_dimension_numbers<[1], [1], [0], [0], [0, 0, 1, 0], [], []>} : vector<16x32xf32>, vector<16x32xf32>, vector<16x16xf32> -> vector<16x16xf32>
    %53 = vector.broadcast %48 : vector<1x16xf32> to vector<16x16xf32>
    %54 = arith.addf %52, %53 : vector<16x16xf32>
    %cst_22 = arith.constant dense<0xFF800000> : vector<16xf32>
    %55 = vector.multi_reduction <maximumf>, %54, %cst_22 [1] : vector<16x16xf32> to vector<16xf32>
    %56 = vector.shape_cast %55 : vector<16xf32> to vector<16x1xf32>
    %57 = vector.broadcast %56 : vector<16x1xf32> to vector<16x16xf32>
    %58 = arith.subf %54, %57 : vector<16x16xf32>
    %59 = math.exp %58 : vector<16x16xf32>
    %cst_23 = arith.constant dense<0.000000e+00> : vector<16xf32>
    %60 = vector.multi_reduction <add>, %59, %cst_23 [1] : vector<16x16xf32> to vector<16xf32>
    %61 = vector.shape_cast %60 : vector<16xf32> to vector<16x1xf32>
    %cst_24 = arith.constant dense<0.000000e+00> : vector<16x32xf32>
    %62 = tpu.matmul %59, %51, %cst_24 {dimension_numbers = #tpu.dot_dimension_numbers<[1], [0], [0], [1], [0, 0, 1, 1], [], []>} : vector<16x16xf32>, vector<16x32xf32>, vector<16x32xf32> -> vector<16x32xf32>
    %63 = tpu.reciprocal %61 {approx = true} : vector<16x1xf32> -> vector<16x1xf32>
    %64 = vector.broadcast %63 : vector<16x1xf32> to vector<16x32xf32>
    %65 = arith.mulf %62, %64 : vector<16x32xf32>
    %66 = vector.extract_strided_slice %39 {offsets = [0, 32], sizes = [16, 32], strides = [1, 1]} : vector<16x128xf32> to vector<16x32xf32>
    %67 = vector.extract_strided_slice %40 {offsets = [0, 32], sizes = [16, 32], strides = [1, 1]} : vector<16x128xf32> to vector<16x32xf32>
    %68 = vector.extract_strided_slice %41 {offsets = [0, 32], sizes = [16, 32], strides = [1, 1]} : vector<16x128xf32> to vector<16x32xf32>
    %cst_25 = arith.constant dense<0.000000e+00> : vector<16x16xf32>
    %69 = tpu.matmul %66, %67, %cst_25 {dimension_numbers = #tpu.dot_dimension_numbers<[1], [1], [0], [0], [0, 0, 1, 0], [], []>} : vector<16x32xf32>, vector<16x32xf32>, vector<16x16xf32> -> vector<16x16xf32>
    %70 = vector.broadcast %48 : vector<1x16xf32> to vector<16x16xf32>
    %71 = arith.addf %69, %70 : vector<16x16xf32>
    %cst_26 = arith.constant dense<0xFF800000> : vector<16xf32>
    %72 = vector.multi_reduction <maximumf>, %71, %cst_26 [1] : vector<16x16xf32> to vector<16xf32>
    %73 = vector.shape_cast %72 : vector<16xf32> to vector<16x1xf32>
    %74 = vector.broadcast %73 : vector<16x1xf32> to vector<16x16xf32>
    %75 = arith.subf %71, %74 : vector<16x16xf32>
    %76 = math.exp %75 : vector<16x16xf32>
    %cst_27 = arith.constant dense<0.000000e+00> : vector<16xf32>
    %77 = vector.multi_reduction <add>, %76, %cst_27 [1] : vector<16x16xf32> to vector<16xf32>
    %78 = vector.shape_cast %77 : vector<16xf32> to vector<16x1xf32>
    %cst_28 = arith.constant dense<0.000000e+00> : vector<16x32xf32>
    %79 = tpu.matmul %76, %68, %cst_28 {dimension_numbers = #tpu.dot_dimension_numbers<[1], [0], [0], [1], [0, 0, 1, 1], [], []>} : vector<16x16xf32>, vector<16x32xf32>, vector<16x32xf32> -> vector<16x32xf32>
    %80 = tpu.reciprocal %78 {approx = true} : vector<16x1xf32> -> vector<16x1xf32>
    %81 = vector.broadcast %80 : vector<16x1xf32> to vector<16x32xf32>
    %82 = arith.mulf %79, %81 : vector<16x32xf32>
    %83 = vector.extract_strided_slice %39 {offsets = [0, 64], sizes = [16, 32], strides = [1, 1]} : vector<16x128xf32> to vector<16x32xf32>
    %84 = vector.extract_strided_slice %40 {offsets = [0, 64], sizes = [16, 32], strides = [1, 1]} : vector<16x128xf32> to vector<16x32xf32>
    %85 = vector.extract_strided_slice %41 {offsets = [0, 64], sizes = [16, 32], strides = [1, 1]} : vector<16x128xf32> to vector<16x32xf32>
    %cst_29 = arith.constant dense<0.000000e+00> : vector<16x16xf32>
    %86 = tpu.matmul %83, %84, %cst_29 {dimension_numbers = #tpu.dot_dimension_numbers<[1], [1], [0], [0], [0, 0, 1, 0], [], []>} : vector<16x32xf32>, vector<16x32xf32>, vector<16x16xf32> -> vector<16x16xf32>
    %87 = vector.broadcast %48 : vector<1x16xf32> to vector<16x16xf32>
    %88 = arith.addf %86, %87 : vector<16x16xf32>
    %cst_30 = arith.constant dense<0xFF800000> : vector<16xf32>
    %89 = vector.multi_reduction <maximumf>, %88, %cst_30 [1] : vector<16x16xf32> to vector<16xf32>
    %90 = vector.shape_cast %89 : vector<16xf32> to vector<16x1xf32>
    %91 = vector.broadcast %90 : vector<16x1xf32> to vector<16x16xf32>
    %92 = arith.subf %88, %91 : vector<16x16xf32>
    %93 = math.exp %92 : vector<16x16xf32>
    %cst_31 = arith.constant dense<0.000000e+00> : vector<16xf32>
    %94 = vector.multi_reduction <add>, %93, %cst_31 [1] : vector<16x16xf32> to vector<16xf32>
    %95 = vector.shape_cast %94 : vector<16xf32> to vector<16x1xf32>
    %cst_32 = arith.constant dense<0.000000e+00> : vector<16x32xf32>
    %96 = tpu.matmul %93, %85, %cst_32 {dimension_numbers = #tpu.dot_dimension_numbers<[1], [0], [0], [1], [0, 0, 1, 1], [], []>} : vector<16x16xf32>, vector<16x32xf32>, vector<16x32xf32> -> vector<16x32xf32>
    %97 = tpu.reciprocal %95 {approx = true} : vector<16x1xf32> -> vector<16x1xf32>
    %98 = vector.broadcast %97 : vector<16x1xf32> to vector<16x32xf32>
    %99 = arith.mulf %96, %98 : vector<16x32xf32>
    %100 = vector.extract_strided_slice %39 {offsets = [0, 96], sizes = [16, 32], strides = [1, 1]} : vector<16x128xf32> to vector<16x32xf32>
    %101 = vector.extract_strided_slice %40 {offsets = [0, 96], sizes = [16, 32], strides = [1, 1]} : vector<16x128xf32> to vector<16x32xf32>
    %102 = vector.extract_strided_slice %41 {offsets = [0, 96], sizes = [16, 32], strides = [1, 1]} : vector<16x128xf32> to vector<16x32xf32>
    %cst_33 = arith.constant dense<0.000000e+00> : vector<16x16xf32>
    %103 = tpu.matmul %100, %101, %cst_33 {dimension_numbers = #tpu.dot_dimension_numbers<[1], [1], [0], [0], [0, 0, 1, 0], [], []>} : vector<16x32xf32>, vector<16x32xf32>, vector<16x16xf32> -> vector<16x16xf32>
    %104 = vector.broadcast %48 : vector<1x16xf32> to vector<16x16xf32>
    %105 = arith.addf %103, %104 : vector<16x16xf32>
    %cst_34 = arith.constant dense<0xFF800000> : vector<16xf32>
    %106 = vector.multi_reduction <maximumf>, %105, %cst_34 [1] : vector<16x16xf32> to vector<16xf32>
    %107 = vector.shape_cast %106 : vector<16xf32> to vector<16x1xf32>
    %108 = vector.broadcast %107 : vector<16x1xf32> to vector<16x16xf32>
    %109 = arith.subf %105, %108 : vector<16x16xf32>
    %110 = math.exp %109 : vector<16x16xf32>
    %cst_35 = arith.constant dense<0.000000e+00> : vector<16xf32>
    %111 = vector.multi_reduction <add>, %110, %cst_35 [1] : vector<16x16xf32> to vector<16xf32>
    %112 = vector.shape_cast %111 : vector<16xf32> to vector<16x1xf32>
    %cst_36 = arith.constant dense<0.000000e+00> : vector<16x32xf32>
    %113 = tpu.matmul %110, %102, %cst_36 {dimension_numbers = #tpu.dot_dimension_numbers<[1], [0], [0], [1], [0, 0, 1, 1], [], []>} : vector<16x16xf32>, vector<16x32xf32>, vector<16x32xf32> -> vector<16x32xf32>
    %114 = tpu.reciprocal %112 {approx = true} : vector<16x1xf32> -> vector<16x1xf32>
    %115 = vector.broadcast %114 : vector<16x1xf32> to vector<16x32xf32>
    %116 = arith.mulf %113, %115 : vector<16x32xf32>
    %117 = tpu.concatenate %65, %82, %99, %116 in 1 : vector<16x32xf32>, vector<16x32xf32>, vector<16x32xf32>, vector<16x32xf32> -> vector<16x128xf32>
    %c0_37 = arith.constant 0 : index
    %c0_38 = arith.constant 0 : index
    %118 = vector.load %arg5[%c0_37, %c0_38] : memref<128x128xf32, #tpu.memory_space<vmem>>, vector<128x128xf32>
    %cst_39 = arith.constant dense<0.000000e+00> : vector<16x128xf32>
    %119 = tpu.matmul %117, %118, %cst_39 {dimension_numbers = #tpu.dot_dimension_numbers<[1], [0], [0], [1], [0, 0, 1, 1], [], []>} : vector<16x128xf32>, vector<128x128xf32>, vector<16x128xf32> -> vector<16x128xf32>
    %c0_40 = arith.constant 0 : index
    %c0_41 = arith.constant 0 : index
    %120 = vector.load %arg6[%c0_40, %c0_41] : memref<1x128xf32, #tpu.memory_space<vmem>>, vector<1x128xf32>
    %121 = vector.shape_cast %120 : vector<1x128xf32> to vector<128xf32>
    %122 = vector.shape_cast %121 : vector<128xf32> to vector<1x128xf32>
    %123 = vector.broadcast %122 : vector<1x128xf32> to vector<16x128xf32>
    %124 = arith.addf %119, %123 : vector<16x128xf32>
    %125 = arith.addf %124, %1 : vector<16x128xf32>
    %c0_42 = arith.constant 0 : index
    %c0_43 = arith.constant 0 : index
    %126 = vector.load %arg9[%c0_42, %c0_43] : memref<1x128xf32, #tpu.memory_space<vmem>>, vector<1x128xf32>
    %127 = vector.shape_cast %126 : vector<1x128xf32> to vector<128xf32>
    %c0_44 = arith.constant 0 : index
    %c0_45 = arith.constant 0 : index
    %128 = vector.load %arg10[%c0_44, %c0_45] : memref<1x128xf32, #tpu.memory_space<vmem>>, vector<1x128xf32>
    %129 = vector.shape_cast %128 : vector<1x128xf32> to vector<128xf32>
    %cst_46 = arith.constant dense<0.000000e+00> : vector<16xf32>
    %130 = vector.multi_reduction <add>, %125, %cst_46 [1] : vector<16x128xf32> to vector<16xf32>
    %131 = vector.shape_cast %130 : vector<16xf32> to vector<16x1xf32>
    %cst_47 = arith.constant 1.280000e+02 : f32
    %132 = vector.broadcast %cst_47 : f32 to vector<16x1xf32>
    %133 = arith.divf %131, %132 : vector<16x1xf32>
    %134 = vector.broadcast %133 : vector<16x1xf32> to vector<16x128xf32>
    %135 = arith.subf %125, %134 : vector<16x128xf32>
    %136 = arith.mulf %135, %135 : vector<16x128xf32>
    %cst_48 = arith.constant dense<0.000000e+00> : vector<16xf32>
    %137 = vector.multi_reduction <add>, %136, %cst_48 [1] : vector<16x128xf32> to vector<16xf32>
    %138 = vector.shape_cast %137 : vector<16xf32> to vector<16x1xf32>
    %cst_49 = arith.constant 1.280000e+02 : f32
    %139 = vector.broadcast %cst_49 : f32 to vector<16x1xf32>
    %140 = arith.divf %138, %139 : vector<16x1xf32>
    %141 = vector.broadcast %133 : vector<16x1xf32> to vector<16x128xf32>
    %142 = arith.subf %125, %141 : vector<16x128xf32>
    %cst_50 = arith.constant 9.99999997E-7 : f32
    %143 = vector.broadcast %cst_50 : f32 to vector<16x1xf32>
    %144 = arith.addf %140, %143 : vector<16x1xf32>
    %145 = math.rsqrt %144 : vector<16x1xf32>
    %146 = vector.broadcast %145 : vector<16x1xf32> to vector<16x128xf32>
    %147 = arith.mulf %142, %146 : vector<16x128xf32>
    %148 = vector.shape_cast %127 : vector<128xf32> to vector<1x128xf32>
    %149 = vector.broadcast %148 : vector<1x128xf32> to vector<16x128xf32>
    %150 = arith.mulf %147, %149 : vector<16x128xf32>
    %151 = vector.shape_cast %129 : vector<128xf32> to vector<1x128xf32>
    %152 = vector.broadcast %151 : vector<1x128xf32> to vector<16x128xf32>
    %153 = arith.addf %150, %152 : vector<16x128xf32>
    %c0_51 = arith.constant 0 : index
    %c0_52 = arith.constant 0 : index
    %154 = vector.load %arg11[%c0_51, %c0_52] : memref<128x256xf32, #tpu.memory_space<vmem>>, vector<128x256xf32>
    %cst_53 = arith.constant dense<0.000000e+00> : vector<16x256xf32>
    %155 = tpu.matmul %153, %154, %cst_53 {dimension_numbers = #tpu.dot_dimension_numbers<[1], [0], [0], [1], [0, 0, 1, 1], [], []>} : vector<16x128xf32>, vector<128x256xf32>, vector<16x256xf32> -> vector<16x256xf32>
    %c0_54 = arith.constant 0 : index
    %c0_55 = arith.constant 0 : index
    %156 = vector.load %arg12[%c0_54, %c0_55] : memref<1x256xf32, #tpu.memory_space<vmem>>, vector<1x256xf32>
    %157 = vector.shape_cast %156 : vector<1x256xf32> to vector<256xf32>
    %158 = vector.shape_cast %157 : vector<256xf32> to vector<1x256xf32>
    %159 = vector.broadcast %158 : vector<1x256xf32> to vector<16x256xf32>
    %160 = arith.addf %155, %159 : vector<16x256xf32>
    %cst_56 = arith.constant 0.000000e+00 : f32
    %161 = vector.broadcast %cst_56 : f32 to vector<16x256xf32>
    %162 = arith.maximumf %160, %161 : vector<16x256xf32>
    %c0_57 = arith.constant 0 : index
    %c0_58 = arith.constant 0 : index
    %163 = vector.load %arg13[%c0_57, %c0_58] : memref<256x128xf32, #tpu.memory_space<vmem>>, vector<256x128xf32>
    %cst_59 = arith.constant dense<0.000000e+00> : vector<16x128xf32>
    %164 = tpu.matmul %162, %163, %cst_59 {dimension_numbers = #tpu.dot_dimension_numbers<[1], [0], [0], [1], [0, 0, 1, 1], [], []>} : vector<16x256xf32>, vector<256x128xf32>, vector<16x128xf32> -> vector<16x128xf32>
    %c0_60 = arith.constant 0 : index
    %c0_61 = arith.constant 0 : index
    %165 = vector.load %arg14[%c0_60, %c0_61] : memref<1x128xf32, #tpu.memory_space<vmem>>, vector<1x128xf32>
    %166 = vector.shape_cast %165 : vector<1x128xf32> to vector<128xf32>
    %167 = vector.shape_cast %166 : vector<128xf32> to vector<1x128xf32>
    %168 = vector.broadcast %167 : vector<1x128xf32> to vector<16x128xf32>
    %169 = arith.addf %164, %168 : vector<16x128xf32>
    %170 = arith.addf %169, %125 : vector<16x128xf32>
    %c0_62 = arith.constant 0 : index
    %c0_63 = arith.constant 0 : index
    %c0_64 = arith.constant 0 : index
    %171 = vector.load %arg15[%c0_62, %c0_63, %c0_64] : memref<1x16x128xf32, #tpu.memory_space<vmem>>, vector<1x16x128xf32>
    %172 = vector.shape_cast %171 : vector<1x16x128xf32> to vector<16x128xf32>
    %173 = vector.shape_cast %170 : vector<16x128xf32> to vector<1x16x128xf32>
    tpu.vector_store %arg15[%c0_62, %c0_63, %c0_64], %173 {strides = array<i32>} : memref<1x16x128xf32, #tpu.memory_space<vmem>>, vector<1x16x128xf32>,
    return
  }
  func.func @transform_0(%arg0: i32) -> (i32, i32, i32) {
    %c0_i32 = arith.constant 0 : i32
    %c0_i32_0 = arith.constant 0 : i32
    %c0_i32_1 = arith.constant 0 : i32
    return %arg0, %c0_i32, %c0_i32_0 : i32, i32, i32
  }
  func.func @transform_1(%arg0: i32) -> (i32, i32, i32) {
    %c0_i32 = arith.constant 0 : i32
    %c0_i32_0 = arith.constant 0 : i32
    %c0_i32_1 = arith.constant 0 : i32
    return %arg0, %c0_i32, %c0_i32_0 : i32, i32, i32
  }
  func.func @transform_2(%arg0: i32) -> (i32, i32) {
    %c0_i32 = arith.constant 0 : i32
    %c0_i32_0 = arith.constant 0 : i32
    %c0_i32_1 = arith.constant 0 : i32
    return %c0_i32, %c0_i32_0 : i32, i32
  }
  func.func @transform_3(%arg0: i32) -> (i32, i32) {
    %c0_i32 = arith.constant 0 : i32
    %c0_i32_0 = arith.constant 0 : i32
    %c0_i32_1 = arith.constant 0 : i32
    return %c0_i32, %c0_i32_0 : i32, i32
  }
  func.func @transform_4(%arg0: i32) -> (i32, i32) {
    %c0_i32 = arith.constant 0 : i32
    %c0_i32_0 = arith.constant 0 : i32
    %c0_i32_1 = arith.constant 0 : i32
    return %c0_i32, %c0_i32_0 : i32, i32
  }
  func.func @transform_5(%arg0: i32) -> (i32, i32) {
    %c0_i32 = arith.constant 0 : i32
    %c0_i32_0 = arith.constant 0 : i32
    %c0_i32_1 = arith.constant 0 : i32
    return %c0_i32, %c0_i32_0 : i32, i32
  }
  func.func @transform_6(%arg0: i32) -> (i32, i32) {
    %c0_i32 = arith.constant 0 : i32
    %c0_i32_0 = arith.constant 0 : i32
    %c0_i32_1 = arith.constant 0 : i32
    return %c0_i32, %c0_i32_0 : i32, i32
  }
  func.func @transform_7(%arg0: i32) -> (i32, i32) {
    %c0_i32 = arith.constant 0 : i32
    %c0_i32_0 = arith.constant 0 : i32
    %c0_i32_1 = arith.constant 0 : i32
    return %c0_i32, %c0_i32_0 : i32, i32
  }
  func.func @transform_8(%arg0: i32) -> (i32, i32) {
    %c0_i32 = arith.constant 0 : i32
    %c0_i32_0 = arith.constant 0 : i32
    %c0_i32_1 = arith.constant 0 : i32
    return %c0_i32, %c0_i32_0 : i32, i32
  }
  func.func @transform_9(%arg0: i32) -> (i32, i32) {
    %c0_i32 = arith.constant 0 : i32
    %c0_i32_0 = arith.constant 0 : i32
    %c0_i32_1 = arith.constant 0 : i32
    return %c0_i32, %c0_i32_0 : i32, i32
  }
  func.func @transform_10(%arg0: i32) -> (i32, i32) {
    %c0_i32 = arith.constant 0 : i32
    %c0_i32_0 = arith.constant 0 : i32
    %c0_i32_1 = arith.constant 0 : i32
    return %c0_i32, %c0_i32_0 : i32, i32
  }
  func.func @transform_11(%arg0: i32) -> (i32, i32) {
    %c0_i32 = arith.constant 0 : i32
    %c0_i32_0 = arith.constant 0 : i32
    %c0_i32_1 = arith.constant 0 : i32
    return %c0_i32, %c0_i32_0 : i32, i32
  }
  func.func @transform_12(%arg0: i32) -> (i32, i32) {
    %c0_i32 = arith.constant 0 : i32
    %c0_i32_0 = arith.constant 0 : i32
    %c0_i32_1 = arith.constant 0 : i32
    return %c0_i32, %c0_i32_0 : i32, i32
  }
  func.func @transform_13(%arg0: i32) -> (i32, i32) {
    %c0_i32 = arith.constant 0 : i32
    %c0_i32_0 = arith.constant 0 : i32
    %c0_i32_1 = arith.constant 0 : i32
    return %c0_i32, %c0_i32_0 : i32, i32
  }
  func.func @transform_14(%arg0: i32) -> (i32, i32, i32) {
    %c0_i32 = arith.constant 0 : i32
    %c0_i32_0 = arith.constant 0 : i32
    %c0_i32_1 = arith.constant 0 : i32
    return %arg0, %c0_i32, %c0_i32_0 : i32, i32, i32
  }
}

</mosaic_0001>

<llo_original>
// kernel: tpu_custom_call.1
$region0: #{tpu_custom_call.1}
  #allocation0 [shape = 'u32[]', space=smem, size = 0x4, offset = 0x4, fixed_abs, tag = 'smem constant byte address 0x4 - core index']
  #allocation1 [shape = 'u32[72,128]{1,0:T(1,128)}', space=vmem, size = 0x9000, scoped, tag = 'internal scratch']
  %s0 = inlined_call_operand.hbm [shape: f32[4,16,128], index: 0, kind: input, shape index: {}]
  %s1 = inlined_call_operand.hbm [shape: s32[4,1,16], index: 1, kind: input, shape index: {}]
  %s2 = inlined_call_operand.hbm [shape: f32[128,384], index: 2, kind: input, shape index: {}]
  %s3 = inlined_call_operand.hbm [shape: f32[1,384], index: 3, kind: input, shape index: {}]
  %s4 = inlined_call_operand.hbm [shape: f32[128,128], index: 4, kind: input, shape index: {}]
  %s5 = inlined_call_operand.vmem [shape: f32[1,128], index: 5, kind: input, shape index: {}]
  %s6 = inlined_call_operand.vmem [shape: f32[1,128], index: 6, kind: input, shape index: {}]
  %s7 = inlined_call_operand.vmem [shape: f32[1,128], index: 7, kind: input, shape index: {}]
  %s8 = inlined_call_operand.vmem [shape: f32[1,128], index: 8, kind: input, shape index: {}]
  %s9 = inlined_call_operand.vmem [shape: f32[1,128], index: 9, kind: input, shape index: {}]
  %s10 = inlined_call_operand.hbm [shape: f32[128,256], index: 10, kind: input, shape index: {}]
  %s11 = inlined_call_operand.vmem [shape: f32[1,256], index: 11, kind: input, shape index: {}]
  %s12 = inlined_call_operand.hbm [shape: f32[256,128], index: 12, kind: input, shape index: {}]
  %s13 = inlined_call_operand.vmem [shape: f32[1,128], index: 13, kind: input, shape index: {}]
  %s14 = inlined_call_operand.hbm [shape: f32[4,16,128], index: 14, kind: output, shape index: {}]
  %s15 = sld [smem:[#allocation0]]
  $region117: #{tpu_custom_call.1} parent=0
    _
  %s17 = ssub.s32 1, %s15
  %s18 = scalar_select 0, %s17, %s15
  $region1: #{tpu_custom_call.1} parent=0
    #allocation2 [shape = 'u8[16384]{0}', space=vmem, size = 0x4000, scoped, tag = 'input window, operand 0']
    #allocation3 [shape = 's32[2]{0}', space=sflag, size = 0x8, scoped, tag = 'scoped memory for tpu_custom_call.1']
    #allocation4 [shape = 's32[2]{0}', space=sflag, size = 0x8, scoped, tag = 'scoped memory for tpu_custom_call.1']
    #allocation5 [shape = 'u8[1024]{0}', space=vmem, size = 0x400, scoped, tag = 'input window, operand 1']
    #allocation6 [shape = 's32[2]{0}', space=sflag, size = 0x8, scoped, tag = 'scoped memory for tpu_custom_call.1']
    #allocation7 [shape = 'u8[196608]{0}', space=vmem, size = 0x30000, scoped, tag = 'input window, operand 2, single buffered']
    #allocation8 [shape = 'u8[1536]{0}', space=vmem, size = 0x800, scoped, tag = 'input window, operand 3, single buffered']
    #allocation9 [shape = 's32[1]{0}', space=sflag, size = 0x4, scoped, tag = 'scoped memory for tpu_custom_call.1']
    #allocation10 [shape = 'u8[65536]{0}', space=vmem, size = 0x10000, scoped, tag = 'input window, operand 4, single buffered']
    #allocation11 [shape = 'u8[131072]{0}', space=vmem, size = 0x20000, scoped, tag = 'input window, operand 10, single buffered']
    #allocation12 [shape = 's32[1]{0}', space=sflag, size = 0x4, scoped, tag = 'scoped memory for tpu_custom_call.1']
    #allocation13 [shape = 'u8[131072]{0}', space=vmem, size = 0x20000, scoped, tag = 'input window, operand 12, single buffered']
    #allocation14 [shape = 'u8[16384]{0}', space=vmem, size = 0x4000, scoped, tag = 'output window, operand 0']
    %19 = vsyncpa [#allocation3], 0
    %s20 = scalar_lea.sflag [#allocation3], 1
    %21 = vsyncpa %s20, 0
    %22 = vsyncpa [#allocation6], 0
    %s23 = scalar_lea.sflag [#allocation6], 1
    %24 = vsyncpa %s23, 0
    %25 = vsyncpa [#allocation9], 0
    %26 = vsyncpa [#allocation12], 0
    %27 = vsyncpa [#allocation4], 0
    %s28 = scalar_lea.sflag [#allocation4], 1
    %29 = vsyncpa %s28, 0
    loop: start=0, step=1, limit=6
    $region2: #{tpu_custom_call.1} parent=1 // loop_pre_header
      _
    $region3: #{tpu_custom_call.1} parent=1 // loop_header
      %s31 = sphi 0, %s35
      %p32 = scmp.ge.s32.totalorder %s31, 6
      %s41 = sphi 0, %s43
      %s44 = sphi 0, %s41
      %s45 = sphi 0, %s44
      %s61 = sphi 0, %s45
      %s67 = sphi 0, %s69
      %s70 = sphi 0, %s67
      %s71 = sphi 0, %s70
      %s87 = sphi 0, %s71
      %s91 = sphi 0, %s91
      %s93 = sphi 0, %s91
      %s94 = sphi 0, %s93
      %s108 = sphi 0, %s94
      %s112 = sphi 0, %s112
      %s114 = sphi 0, %s112
      %s115 = sphi 0, %s114
      %s129 = sphi 0, %s115
      %s133 = sphi 0, %s133
      %s135 = sphi 0, %s133
      %s136 = sphi 0, %s135
      %s150 = sphi 0, %s136
      %s154 = sphi 0, %s154
      %s156 = sphi 0, %s154
      %s157 = sphi 0, %s156
      %s171 = sphi 0, %s157
      %s175 = sphi 0, %s175
      %s177 = sphi 0, %s175
      %s178 = sphi 0, %s177
      %s192 = sphi 0, %s178
      %s196 = sphi 0, %s196
      %s198 = sphi 0, %s196
      %s199 = sphi 0, %s198
      %s213 = sphi 0, %s199
      %s217 = sphi 0, %s217
      %s219 = sphi 0, %s217
      %s220 = sphi 0, %s219
      %s234 = sphi 0, %s220
      %s238 = sphi 0, %s238
      %s240 = sphi 0, %s238
      %s241 = sphi 0, %s240
      %s255 = sphi 0, %s241
      %s259 = sphi 0, %s259
      %s261 = sphi 0, %s259
      %s262 = sphi 0, %s261
      %s276 = sphi 0, %s262
      %s280 = sphi 0, %s280
      %s282 = sphi 0, %s280
      %s283 = sphi 0, %s282
      %s297 = sphi 0, %s283
      %s301 = sphi 0, %s301
      %s303 = sphi 0, %s301
      %s304 = sphi 0, %s303
      %s318 = sphi 0, %s304
      %s322 = sphi 0, %s322
      %s324 = sphi 0, %s322
      %s325 = sphi 0, %s324
      %s339 = sphi 0, %s325
      %s345 = sphi 0, %s347
      %s348 = sphi 0, %s345
      %s349 = sphi 0, %s348
      %s365 = sphi 0, %s349
    $region4: #{tpu_custom_call.1} parent=1 // loop_header_branch
      %34 = sbr.rel (%p32) target = $region8
    $region5: #{tpu_custom_call.1} parent=1 // loop_body
      %s36 = ssub.s32 %s31, 1
      %s37 = ssub.s32 %s31, 2
      %s38 = sadd.s32 %s31, 1
      %s39 = ssub.s32 %s31, %s38
      %p40 = scmp.eq.s32.totalorder %s39, 0
      %s42 = sadd.s32 %s41, 1
      %s43 = scalar_select %p40, %s41, %s42
      %p46 = pneg %p40
      %p47 = scmp.eq.s32.totalorder %s31, 3
      %p48 = por %p46, %p47
      %p49 = scmp.ne.s32.totalorder %s41, %s44
      %p50 = scmp.eq.s32.totalorder %s31, 0
      %p51 = por %p49, %p50
      %p52 = scmp.ne.s32.totalorder %s41, %s44
      %p53 = scmp.eq.s32.totalorder %s36, 3
      %p54 = por %p52, %p53
      %p55 = scmp.ne.s32.totalorder %s44, %s45
      %p56 = scmp.eq.s32.totalorder %s36, 0
      %p57 = por %p55, %p56
      %p58 = scmp.ne.s32.totalorder %s44, %s45
      %p59 = scmp.eq.s32.totalorder %s37, 3
      %p60 = por %p58, %p59
      %p62 = scmp.ne.s32.totalorder %s45, %s61
      %p63 = scmp.eq.s32.totalorder %s37, 0
      %p64 = por %p62, %p63
      %s65 = ssub.s32 %s31, %s38
      %p66 = scmp.eq.s32.totalorder %s65, 0
      %s68 = sadd.s32 %s67, 1
      %s69 = scalar_select %p66, %s67, %s68
      %p72 = pneg %p66
      %p73 = scmp.eq.s32.totalorder %s31, 3
      %p74 = por %p72, %p73
      %p75 = scmp.ne.s32.totalorder %s67, %s70
      %p76 = scmp.eq.s32.totalorder %s31, 0
      %p77 = por %p75, %p76
      %p78 = scmp.ne.s32.totalorder %s67, %s70
      %p79 = scmp.eq.s32.totalorder %s36, 3
      %p80 = por %p78, %p79
      %p81 = scmp.ne.s32.totalorder %s70, %s71
      %p82 = scmp.eq.s32.totalorder %s36, 0
      %p83 = por %p81, %p82
      %p84 = scmp.ne.s32.totalorder %s70, %s71
      %p85 = scmp.eq.s32.totalorder %s37, 3
      %p86 = por %p84, %p85
      %p88 = scmp.ne.s32.totalorder %s71, %s87
      %p89 = scmp.eq.s32.totalorder %s37, 0
      %p90 = por %p88, %p89
      %s92 = sadd.s32 %s91, 1
      %p95 = scmp.eq.s32.totalorder %s31, 3
      %p96 = scmp.ne.s32.totalorder %s91, %s93
      %p97 = scmp.eq.s32.totalorder %s31, 0
      %p98 = por %p96, %p97
      %p99 = scmp.ne.s32.totalorder %s91, %s93
      %p100 = scmp.eq.s32.totalorder %s36, 3
      %p101 = por %p99, %p100
      %p102 = scmp.ne.s32.totalorder %s93, %s94
      %p103 = scmp.eq.s32.totalorder %s36, 0
      %p104 = por %p102, %p103
      %p105 = scmp.ne.s32.totalorder %s93, %s94
      %p106 = scmp.eq.s32.totalorder %s37, 3
      %p107 = por %p105, %p106
      %p109 = scmp.ne.s32.totalorder %s94, %s108
      %p110 = scmp.eq.s32.totalorder %s37, 0
      %p111 = por %p109, %p110
      %s113 = sadd.s32 %s112, 1
      %p116 = scmp.eq.s32.totalorder %s31, 3
      %p117 = scmp.ne.s32.totalorder %s112, %s114
      %p118 = scmp.eq.s32.totalorder %s31, 0
      %p119 = por %p117, %p118
      %p120 = scmp.ne.s32.totalorder %s112, %s114
      %p121 = scmp.eq.s32.totalorder %s36, 3
      %p122 = por %p120, %p121
      %p123 = scmp.ne.s32.totalorder %s114, %s115
      %p124 = scmp.eq.s32.totalorder %s36, 0
      %p125 = por %p123, %p124
      %p126 = scmp.ne.s32.totalorder %s114, %s115
      %p127 = scmp.eq.s32.totalorder %s37, 3
      %p128 = por %p126, %p127
      %p130 = scmp.ne.s32.totalorder %s115, %s129
      %p131 = scmp.eq.s32.totalorder %s37, 0
      %p132 = por %p130, %p131
      %s134 = sadd.s32 %s133, 1
      %p137 = scmp.eq.s32.totalorder %s31, 3
      %p138 = scmp.ne.s32.totalorder %s133, %s135
      %p139 = scmp.eq.s32.totalorder %s31, 0
      %p140 = por %p138, %p139
      %p141 = scmp.ne.s32.totalorder %s133, %s135
      %p142 = scmp.eq.s32.totalorder %s36, 3
      %p143 = por %p141, %p142
      %p144 = scmp.ne.s32.totalorder %s135, %s136
      %p145 = scmp.eq.s32.totalorder %s36, 0
      %p146 = por %p144, %p145
      %p147 = scmp.ne.s32.totalorder %s135, %s136
      %p148 = scmp.eq.s32.totalorder %s37, 3
      %p149 = por %p147, %p148
      %p151 = scmp.ne.s32.totalorder %s136, %s150
      %p152 = scmp.eq.s32.totalorder %s37, 0
      %p153 = por %p151, %p152
      %s155 = sadd.s32 %s154, 1
      %p158 = scmp.eq.s32.totalorder %s31, 3
      %p159 = scmp.ne.s32.totalorder %s154, %s156
      %p160 = scmp.eq.s32.totalorder %s31, 0
      %p161 = por %p159, %p160
      %p162 = scmp.ne.s32.totalorder %s154, %s156
      %p163 = scmp.eq.s32.totalorder %s36, 3
      %p164 = por %p162, %p163
      %p165 = scmp.ne.s32.totalorder %s156, %s157
      %p166 = scmp.eq.s32.totalorder %s36, 0
      %p167 = por %p165, %p166
      %p168 = scmp.ne.s32.totalorder %s156, %s157
      %p169 = scmp.eq.s32.totalorder %s37, 3
      %p170 = por %p168, %p169
      %p172 = scmp.ne.s32.totalorder %s157, %s171
      %p173 = scmp.eq.s32.totalorder %s37, 0
      %p174 = por %p172, %p173
      %s176 = sadd.s32 %s175, 1
      %p179 = scmp.eq.s32.totalorder %s31, 3
      %p180 = scmp.ne.s32.totalorder %s175, %s177
      %p181 = scmp.eq.s32.totalorder %s31, 0
      %p182 = por %p180, %p181
      %p183 = scmp.ne.s32.totalorder %s175, %s177
      %p184 = scmp.eq.s32.totalorder %s36, 3
      %p185 = por %p183, %p184
      %p186 = scmp.ne.s32.totalorder %s177, %s178
      %p187 = scmp.eq.s32.totalorder %s36, 0
      %p188 = por %p186, %p187
      %p189 = scmp.ne.s32.totalorder %s177, %s178
      %p190 = scmp.eq.s32.totalorder %s37, 3
      %p191 = por %p189, %p190
      %p193 = scmp.ne.s32.totalorder %s178, %s192
      %p194 = scmp.eq.s32.totalorder %s37, 0
      %p195 = por %p193, %p194
      %s197 = sadd.s32 %s196, 1
      %p200 = scmp.eq.s32.totalorder %s31, 3
      %p201 = scmp.ne.s32.totalorder %s196, %s198
      %p202 = scmp.eq.s32.totalorder %s31, 0
      %p203 = por %p201, %p202
      %p204 = scmp.ne.s32.totalorder %s196, %s198
      %p205 = scmp.eq.s32.totalorder %s36, 3
      %p206 = por %p204, %p205
      %p207 = scmp.ne.s32.totalorder %s198, %s199
      %p208 = scmp.eq.s32.totalorder %s36, 0
      %p209 = por %p207, %p208
      %p210 = scmp.ne.s32.totalorder %s198, %s199
      %p211 = scmp.eq.s32.totalorder %s37, 3
      %p212 = por %p210, %p211
      %p214 = scmp.ne.s32.totalorder %s199, %s213
      %p215 = scmp.eq.s32.totalorder %s37, 0
      %p216 = por %p214, %p215
      %s218 = sadd.s32 %s217, 1
      %p221 = scmp.eq.s32.totalorder %s31, 3
      %p222 = scmp.ne.s32.totalorder %s217, %s219
      %p223 = scmp.eq.s32.totalorder %s31, 0
      %p224 = por %p222, %p223
      %p225 = scmp.ne.s32.totalorder %s217, %s219
      %p226 = scmp.eq.s32.totalorder %s36, 3
      %p227 = por %p225, %p226
      %p228 = scmp.ne.s32.totalorder %s219, %s220
      %p229 = scmp.eq.s32.totalorder %s36, 0
      %p230 = por %p228, %p229
      %p231 = scmp.ne.s32.totalorder %s219, %s220
      %p232 = scmp.eq.s32.totalorder %s37, 3
      %p233 = por %p231, %p232
      %p235 = scmp.ne.s32.totalorder %s220, %s234
      %p236 = scmp.eq.s32.totalorder %s37, 0
      %p237 = por %p235, %p236
      %s239 = sadd.s32 %s238, 1
      %p242 = scmp.eq.s32.totalorder %s31, 3
      %p243 = scmp.ne.s32.totalorder %s238, %s240
      %p244 = scmp.eq.s32.totalorder %s31, 0
      %p245 = por %p243, %p244
      %p246 = scmp.ne.s32.totalorder %s238, %s240
      %p247 = scmp.eq.s32.totalorder %s36, 3
      %p248 = por %p246, %p247
      %p249 = scmp.ne.s32.totalorder %s240, %s241
      %p250 = scmp.eq.s32.totalorder %s36, 0
      %p251 = por %p249, %p250
      %p252 = scmp.ne.s32.totalorder %s240, %s241
      %p253 = scmp.eq.s32.totalorder %s37, 3
      %p254 = por %p252, %p253
      %p256 = scmp.ne.s32.totalorder %s241, %s255
      %p257 = scmp.eq.s32.totalorder %s37, 0
      %p258 = por %p256, %p257
      %s260 = sadd.s32 %s259, 1
      %p263 = scmp.eq.s32.totalorder %s31, 3
      %p264 = scmp.ne.s32.totalorder %s259, %s261
      %p265 = scmp.eq.s32.totalorder %s31, 0
      %p266 = por %p264, %p265
      %p267 = scmp.ne.s32.totalorder %s259, %s261
      %p268 = scmp.eq.s32.totalorder %s36, 3
      %p269 = por %p267, %p268
      %p270 = scmp.ne.s32.totalorder %s261, %s262
      %p271 = scmp.eq.s32.totalorder %s36, 0
      %p272 = por %p270, %p271
      %p273 = scmp.ne.s32.totalorder %s261, %s262
      %p274 = scmp.eq.s32.totalorder %s37, 3
      %p275 = por %p273, %p274
      %p277 = scmp.ne.s32.totalorder %s262, %s276
      %p278 = scmp.eq.s32.totalorder %s37, 0
      %p279 = por %p277, %p278
      %s281 = sadd.s32 %s280, 1
      %p284 = scmp.eq.s32.totalorder %s31, 3
      %p285 = scmp.ne.s32.totalorder %s280, %s282
      %p286 = scmp.eq.s32.totalorder %s31, 0
      %p287 = por %p285, %p286
      %p288 = scmp.ne.s32.totalorder %s280, %s282
      %p289 = scmp.eq.s32.totalorder %s36, 3
      %p290 = por %p288, %p289
      %p291 = scmp.ne.s32.totalorder %s282, %s283
      %p292 = scmp.eq.s32.totalorder %s36, 0
      %p293 = por %p291, %p292
      %p294 = scmp.ne.s32.totalorder %s282, %s283
      %p295 = scmp.eq.s32.totalorder %s37, 3
      %p296 = por %p294, %p295
      %p298 = scmp.ne.s32.totalorder %s283, %s297
      %p299 = scmp.eq.s32.totalorder %s37, 0
      %p300 = por %p298, %p299
      %s302 = sadd.s32 %s301, 1
      %p305 = scmp.eq.s32.totalorder %s31, 3
      %p306 = scmp.ne.s32.totalorder %s301, %s303
      %p307 = scmp.eq.s32.totalorder %s31, 0
      %p308 = por %p306, %p307
      %p309 = scmp.ne.s32.totalorder %s301, %s303
      %p310 = scmp.eq.s32.totalorder %s36, 3
      %p311 = por %p309, %p310
      %p312 = scmp.ne.s32.totalorder %s303, %s304
      %p313 = scmp.eq.s32.totalorder %s36, 0
      %p314 = por %p312, %p313
      %p315 = scmp.ne.s32.totalorder %s303, %s304
      %p316 = scmp.eq.s32.totalorder %s37, 3
      %p317 = por %p315, %p316
      %p319 = scmp.ne.s32.totalorder %s304, %s318
      %p320 = scmp.eq.s32.totalorder %s37, 0
      %p321 = por %p319, %p320
      %s323 = sadd.s32 %s322, 1
      %p326 = scmp.eq.s32.totalorder %s31, 3
      %p327 = scmp.ne.s32.totalorder %s322, %s324
      %p328 = scmp.eq.s32.totalorder %s31, 0
      %p329 = por %p327, %p328
      %p330 = scmp.ne.s32.totalorder %s322, %s324
      %p331 = scmp.eq.s32.totalorder %s36, 3
      %p332 = por %p330, %p331
      %p333 = scmp.ne.s32.totalorder %s324, %s325
      %p334 = scmp.eq.s32.totalorder %s36, 0
      %p335 = por %p333, %p334
      %p336 = scmp.ne.s32.totalorder %s324, %s325
      %p337 = scmp.eq.s32.totalorder %s37, 3
      %p338 = por %p336, %p337
      %p340 = scmp.ne.s32.totalorder %s325, %s339
      %p341 = scmp.eq.s32.totalorder %s37, 0
      %p342 = por %p340, %p341
      %s343 = ssub.s32 %s31, %s38
      %p344 = scmp.eq.s32.totalorder %s343, 0
      %s346 = sadd.s32 %s345, 1
      %s347 = scalar_select %p344, %s345, %s346
      %p350 = pneg %p344
      %p351 = scmp.eq.s32.totalorder %s31, 3
      %p352 = por %p350, %p351
      %p353 = scmp.ne.s32.totalorder %s345, %s348
      %p354 = scmp.eq.s32.totalorder %s31, 0
      %p355 = por %p353, %p354
      %p356 = scmp.ne.s32.totalorder %s345, %s348
      %p357 = scmp.eq.s32.totalorder %s36, 3
      %p358 = por %p356, %p357
      %p359 = scmp.ne.s32.totalorder %s348, %s349
      %p360 = scmp.eq.s32.totalorder %s36, 0
      %p361 = por %p359, %p360
      %p362 = scmp.ne.s32.totalorder %s348, %s349
      %p363 = scmp.eq.s32.totalorder %s37, 3
      %p364 = por %p362, %p363
      %p366 = scmp.ne.s32.totalorder %s349, %s365
      %p367 = scmp.eq.s32.totalorder %s37, 0
      %p368 = por %p366, %p367
      %p369 = scmp.le.s32.totalorder 1, %s31
      %p370 = scmp.lt.s32.totalorder %s31, 5
      %p371 = pnand %p369, %p370
      %p372 = pneg %p371
      // Predicated region
      $region9: #{tpu_custom_call.1} parent=5 // pred_check
        _
      $region10: #{tpu_custom_call.1} parent=5 // pred_check_branch
        %374 = sbr.rel (%p371) target = $region12
      $region11: #{tpu_custom_call.1} parent=5 // pred_region
        %s375 = ssub.s32 %s31, 1
        // Predicated region
        $region13: #{tpu_custom_call.1} parent=11 // pred_check
          %p376 = pneg %p104
        $region14: #{tpu_custom_call.1} parent=11 // pred_check_branch
          %378 = sbr.rel (%p376) target = $region16
        $region15: #{tpu_custom_call.1} parent=11 // pred_region
          %380 = vsyncadd [#allocation6], 0
          %s381 = sshll.u32 %s2, 4
          %s382 = int_to_ptr.hbm [resolvable:$true] %s381
          %s383 = sshll.u32 [#allocation7], 4
          %s384 = int_to_ptr.vmem [resolvable:$true] %s383
          %389 = dma.hbm_to_vmem [thread:$0]  %s382, 6144, %s384, [#allocation6], 384, 384, 24
        $region16: #{tpu_custom_call.1} parent=11 // pred_fallthru
          _
        // Predicated region
        $region17: #{tpu_custom_call.1} parent=11 // pred_check
          %p390 = pneg %p125
        $region18: #{tpu_custom_call.1} parent=11 // pred_check_branch
          %392 = sbr.rel (%p390) target = $region20
        $region19: #{tpu_custom_call.1} parent=11 // pred_region
          %394 = vsyncadd [#allocation9], 0
          %s396 = sshll.u32 %s3, 4
          %s397 = int_to_ptr.hbm [resolvable:$true] %s396
          %s398 = sshll.u32 [#allocation8], 4
          %s399 = int_to_ptr.vmem [resolvable:$true] %s398
          %401 = dma.hbm_to_vmem [thread:$0]  %s397, 48, %s399, [#allocation9]
        $region20: #{tpu_custom_call.1} parent=11 // pred_fallthru
          _
        // Predicated region
        $region21: #{tpu_custom_call.1} parent=11 // pred_check
          %p402 = pneg %p146
        $region22: #{tpu_custom_call.1} parent=11 // pred_check_branch
          %404 = sbr.rel (%p402) target = $region24
        $region23: #{tpu_custom_call.1} parent=11 // pred_region
          %406 = vsyncadd [#allocation9], 0
          %s407 = sshll.u32 %s4, 4
          %s408 = int_to_ptr.hbm [resolvable:$true] %s407
          %s409 = sshll.u32 [#allocation10], 4
          %s410 = int_to_ptr.vmem [resolvable:$true] %s409
          %415 = dma.hbm_to_vmem [thread:$0]  %s408, 2048, %s410, [#allocation9], 128, 128, 8
        $region24: #{tpu_custom_call.1} parent=11 // pred_fallthru
          _
        // Predicated region
        $region25: #{tpu_custom_call.1} parent=11 // pred_check
          %p416 = pneg %p167
        $region26: #{tpu_custom_call.1} parent=11 // pred_check_branch
          %418 = sbr.rel (%p416) target = $region28
        $region27: #{tpu_custom_call.1} parent=11 // pred_region
          _
        $region28: #{tpu_custom_call.1} parent=11 // pred_fallthru
          _
        // Predicated region
        $region29: #{tpu_custom_call.1} parent=11 // pred_check
          %p419 = pneg %p188
        $region30: #{tpu_custom_call.1} parent=11 // pred_check_branch
          %421 = sbr.rel (%p419) target = $region32
        $region31: #{tpu_custom_call.1} parent=11 // pred_region
          _
        $region32: #{tpu_custom_call.1} parent=11 // pred_fallthru
          _
        // Predicated region
        $region33: #{tpu_custom_call.1} parent=11 // pred_check
          %p422 = pneg %p209
        $region34: #{tpu_custom_call.1} parent=11 // pred_check_branch
          %424 = sbr.rel (%p422) target = $region36
        $region35: #{tpu_custom_call.1} parent=11 // pred_region
          _
        $region36: #{tpu_custom_call.1} parent=11 // pred_fallthru
          _
        // Predicated region
        $region37: #{tpu_custom_call.1} parent=11 // pred_check
          %p425 = pneg %p230
        $region38: #{tpu_custom_call.1} parent=11 // pred_check_branch
          %427 = sbr.rel (%p425) target = $region40
        $region39: #{tpu_custom_call.1} parent=11 // pred_region
          _
        $region40: #{tpu_custom_call.1} parent=11 // pred_fallthru
          _
        // Predicated region
        $region41: #{tpu_custom_call.1} parent=11 // pred_check
          %p428 = pneg %p251
        $region42: #{tpu_custom_call.1} parent=11 // pred_check_branch
          %430 = sbr.rel (%p428) target = $region44
        $region43: #{tpu_custom_call.1} parent=11 // pred_region
          _
        $region44: #{tpu_custom_call.1} parent=11 // pred_fallthru
          _
        // Predicated region
        $region45: #{tpu_custom_call.1} parent=11 // pred_check
          %p431 = pneg %p272
        $region46: #{tpu_custom_call.1} parent=11 // pred_check_branch
          %433 = sbr.rel (%p431) target = $region48
        $region47: #{tpu_custom_call.1} parent=11 // pred_region
          %435 = vsyncadd [#allocation12], 0
          %s436 = sshll.u32 %s10, 4
          %s437 = int_to_ptr.hbm [resolvable:$true] %s436
          %s438 = sshll.u32 [#allocation11], 4
          %s439 = int_to_ptr.vmem [resolvable:$true] %s438
          %444 = dma.hbm_to_vmem [thread:$0]  %s437, 4096, %s439, [#allocation12], 256, 256, 16
        $region48: #{tpu_custom_call.1} parent=11 // pred_fallthru
          _
        // Predicated region
        $region49: #{tpu_custom_call.1} parent=11 // pred_check
          %p445 = pneg %p293
        $region50: #{tpu_custom_call.1} parent=11 // pred_check_branch
          %447 = sbr.rel (%p445) target = $region52
        $region51: #{tpu_custom_call.1} parent=11 // pred_region
          _
        $region52: #{tpu_custom_call.1} parent=11 // pred_fallthru
          _
        // Predicated region
        $region53: #{tpu_custom_call.1} parent=11 // pred_check
          %p448 = pneg %p314
        $region54: #{tpu_custom_call.1} parent=11 // pred_check_branch
          %450 = sbr.rel (%p448) target = $region56
        $region55: #{tpu_custom_call.1} parent=11 // pred_region
          %452 = vsyncadd [#allocation12], 0
          %s453 = sshll.u32 %s12, 4
          %s454 = int_to_ptr.hbm [resolvable:$true] %s453
          %s455 = sshll.u32 [#allocation13], 4
          %s456 = int_to_ptr.vmem [resolvable:$true] %s455
          %461 = dma.hbm_to_vmem [thread:$0]  %s454, 4096, %s456, [#allocation12], 128, 128, 8
        $region56: #{tpu_custom_call.1} parent=11 // pred_fallthru
          _
        // Predicated region
        $region57: #{tpu_custom_call.1} parent=11 // pred_check
          %p462 = pneg %p335
        $region58: #{tpu_custom_call.1} parent=11 // pred_check_branch
          %464 = sbr.rel (%p462) target = $region60
        $region59: #{tpu_custom_call.1} parent=11 // pred_region
          _
        $region60: #{tpu_custom_call.1} parent=11 // pred_fallthru
          _
      $region12: #{tpu_custom_call.1} parent=5 // pred_fallthru
        _
      %p465 = scmp.lt.s32.totalorder %s31, 4
      // Predicated region
      $region61: #{tpu_custom_call.1} parent=5 // pred_check
        %p466 = pneg %p465
      $region62: #{tpu_custom_call.1} parent=5 // pred_check_branch
        %468 = sbr.rel (%p466) target = $region64
      $region63: #{tpu_custom_call.1} parent=5 // pred_region
        // Predicated region
        $region65: #{tpu_custom_call.1} parent=63 // pred_check
          %p469 = pneg %p51
        $region66: #{tpu_custom_call.1} parent=63 // pred_check_branch
          %471 = sbr.rel (%p469) target = $region68
        $region67: #{tpu_custom_call.1} parent=63 // pred_region
          %s472 = sand.u32 %s41, 1
          %s473 = scalar_lea.sflag [#allocation3], %s472
          %s474 = sand.u32 %s41, 1
          %s475 = smul.addr %s474, 16
          %s476 = scalar_lea.vmem [#allocation2], %s475
          %478 = vsyncadd %s473, 0
          %s479 = smul.addr %s31, 2
          %s480 = smul.addr %s479, 8
          %s481 = scalar_lea.hbm %s0, %s480
          %s482 = sshll.u32 %s481, 4
          %s483 = int_to_ptr.hbm [resolvable:$true] %s482
          %s484 = sshll.u32 %s476, 4
          %s485 = int_to_ptr.vmem [resolvable:$true] %s484
          %490 = dma.hbm_to_vmem [thread:$0]  %s483, 256, %s485, %s473, 128, 128, 8
        $region68: #{tpu_custom_call.1} parent=63 // pred_fallthru
          _
        // Predicated region
        $region69: #{tpu_custom_call.1} parent=63 // pred_check
          %p491 = pneg %p77
        $region70: #{tpu_custom_call.1} parent=63 // pred_check_branch
          %493 = sbr.rel (%p491) target = $region72
        $region71: #{tpu_custom_call.1} parent=63 // pred_region
          %s494 = sand.u32 %s31, 1
          %s495 = scalar_lea.sflag [#allocation6], %s494
          %s496 = sand.u32 %s67, 1
          %s497 = scalar_lea.vmem [#allocation5], %s496
          %499 = vsyncadd %s495, 0
          %s500 = scalar_lea.hbm %s1, %s31
          %s502 = sshll.u32 %s500, 4
          %s503 = int_to_ptr.hbm [resolvable:$true] %s502
          %s504 = sshll.u32 %s497, 4
          %s505 = int_to_ptr.vmem [resolvable:$true] %s504
          %507 = dma.hbm_to_vmem [thread:$0]  %s503, 16, %s505, %s495
        $region72: #{tpu_custom_call.1} parent=63 // pred_fallthru
          _
      $region64: #{tpu_custom_call.1} parent=5 // pred_fallthru
        _
      %p508 = scmp.le.s32.totalorder 1, %s31
      %p509 = scmp.lt.s32.totalorder %s31, 5
      %p510 = pnand %p508, %p509
      %p511 = pneg %p510
      // Predicated region
      $region73: #{tpu_custom_call.1} parent=5 // pred_check
        _
      $region74: #{tpu_custom_call.1} parent=5 // pred_check_branch
        %513 = sbr.rel (%p510) target = $region76
      $region75: #{tpu_custom_call.1} parent=5 // pred_region
        %s514 = ssub.s32 %s31, 1
        %s515 = sand.u32 %s44, 1
        %s516 = scalar_lea.sflag [#allocation3], %s515
        %s517 = sand.u32 %s44, 1
        %s518 = smul.addr %s517, 16
        %s519 = scalar_lea.vmem [#allocation2], %s518
        // Predicated region
        $region77: #{tpu_custom_call.1} parent=75 // pred_check
          %p520 = pneg %p57
        $region78: #{tpu_custom_call.1} parent=75 // pred_check_branch
          %522 = sbr.rel (%p520) target = $region80
        $region79: #{tpu_custom_call.1} parent=75 // pred_region
          %524 = dma.done %s516, 256
        $region80: #{tpu_custom_call.1} parent=75 // pred_fallthru
          _
        %s525 = sand.u32 %s36, 1
        %s526 = scalar_lea.sflag [#allocation6], %s525
        %s527 = sand.u32 %s70, 1
        %s528 = scalar_lea.vmem [#allocation5], %s527
        // Predicated region
        $region81: #{tpu_custom_call.1} parent=75 // pred_check
          %p529 = pneg %p83
        $region82: #{tpu_custom_call.1} parent=75 // pred_check_branch
          %531 = sbr.rel (%p529) target = $region84
        $region83: #{tpu_custom_call.1} parent=75 // pred_region
          %533 = dma.done %s526, 16
        $region84: #{tpu_custom_call.1} parent=75 // pred_fallthru
          _
        // Predicated region
        $region85: #{tpu_custom_call.1} parent=75 // pred_check
          %p534 = pneg %p104
        $region86: #{tpu_custom_call.1} parent=75 // pred_check_branch
          %536 = sbr.rel (%p534) target = $region88
        $region87: #{tpu_custom_call.1} parent=75 // pred_region
          %538 = dma.done [#allocation6], 6144
        $region88: #{tpu_custom_call.1} parent=75 // pred_fallthru
          _
        // Predicated region
        $region89: #{tpu_custom_call.1} parent=75 // pred_check
          %p539 = pneg %p125
        $region90: #{tpu_custom_call.1} parent=75 // pred_check_branch
          %541 = sbr.rel (%p539) target = $region92
        $region91: #{tpu_custom_call.1} parent=75 // pred_region
          %543 = dma.done [#allocation9], 48
        $region92: #{tpu_custom_call.1} parent=75 // pred_fallthru
          _
        // Predicated region
        $region93: #{tpu_custom_call.1} parent=75 // pred_check
          %p544 = pneg %p146
        $region94: #{tpu_custom_call.1} parent=75 // pred_check_branch
          %546 = sbr.rel (%p544) target = $region96
        $region95: #{tpu_custom_call.1} parent=75 // pred_region
          %548 = dma.done [#allocation9], 2048
        $region96: #{tpu_custom_call.1} parent=75 // pred_fallthru
          _
        // Predicated region
        $region97: #{tpu_custom_call.1} parent=75 // pred_check
          %p549 = pneg %p272
        $region98: #{tpu_custom_call.1} parent=75 // pred_check_branch
          %551 = sbr.rel (%p549) target = $region100
        $region99: #{tpu_custom_call.1} parent=75 // pred_region
          %553 = dma.done [#allocation12], 4096
        $region100: #{tpu_custom_call.1} parent=75 // pred_fallthru
          _
        // Predicated region
        $region101: #{tpu_custom_call.1} parent=75 // pred_check
          %p554 = pneg %p314
        $region102: #{tpu_custom_call.1} parent=75 // pred_check_branch
          %556 = sbr.rel (%p554) target = $region104
        $region103: #{tpu_custom_call.1} parent=75 // pred_region
          %558 = dma.done [#allocation12], 4096
        $region104: #{tpu_custom_call.1} parent=75 // pred_fallthru
          _
        %s559 = sand.u32 %s44, 1
        %s560 = scalar_lea.sflag [#allocation3], %s559
        %s561 = sand.u32 %s44, 1
        %s562 = smul.addr %s561, 16
        %s563 = scalar_lea.vmem [#allocation2], %s562
        %p564 = pneg %p57
        %p565 = pneg %p54
        %s566 = sand.u32 %s36, 1
        %s567 = scalar_lea.sflag [#allocation6], %s566
        %s568 = sand.u32 %s70, 1
        %s569 = scalar_lea.vmem [#allocation5], %s568
        %p570 = pneg %p83
        %p571 = pneg %p80
        %p572 = pneg %p104
        %p573 = pneg %p101
        %p574 = pneg %p125
        %p575 = pneg %p122
        %p576 = pneg %p146
        %p577 = pneg %p143
        %p578 = pneg %p167
        %p579 = pneg %p164
        %p580 = pneg %p188
        %p581 = pneg %p185
        %p582 = pneg %p209
        %p583 = pneg %p206
        %p584 = pneg %p230
        %p585 = pneg %p227
        %p586 = pneg %p251
        %p587 = pneg %p248
        %p588 = pneg %p272
        %p589 = pneg %p269
        %p590 = pneg %p293
        %p591 = pneg %p290
        %p592 = pneg %p314
        %p593 = pneg %p311
        %p594 = pneg %p335
        %p595 = pneg %p332
        %p596 = pneg %p361
        %p597 = pneg %p358
        %s598 = sand.u32 %s348, 1
        %s599 = scalar_lea.sflag [#allocation4], %s598
        %s600 = sand.u32 %s348, 1
        %s601 = smul.addr %s600, 16
        %s602 = scalar_lea.vmem [#allocation14], %s601
        %v603 = vld [vmem:[%s519] sm:$0xff]
        %v604 = vld [vmem:[%s519 + $0x8] sm:$0xff]
        %v605 = vld [vmem:[%s6] sm:$0x1]
        %v606 = vld [vmem:[%s7] sm:$0x1]
        %607 = vadd.xlane.f32.xlu0 %v603
        %v608 = vpop.xlane.xlu0 %607
        %609 = vadd.xlane.f32.xlu0 %v604
        %v610 = vpop.xlane.xlu0 %609
        %v611 = vrcp.pop 128.0
        %v612 = vmul.f32 128.0, %v611
        %v613 = vsub.f32 1.0, %v612
        %v614 = vmul.f32 %v611, %v613
        %v615 = vadd.f32 %v611, %v614
        %vm616 = vweird.f32 %v611
        %v617 = vsel %vm616, %v611, %v615
        %v618 = vmul.f32 %v608, %v617
        %v619 = vmul.f32 %v610, %v617
        %v620 = vsub.f32 %v603, %v618
        %v621 = vsub.f32 %v604, %v619
        %v622 = vmul.f32 %v620, %v620
        %v623 = vmul.f32 %v621, %v621
        %624 = vadd.xlane.f32.xlu0 %v622
        %v625 = vpop.xlane.xlu0 %624
        %626 = vadd.xlane.f32.xlu0 %v623
        %v627 = vpop.xlane.xlu0 %626
        %v628 = vmul.f32 %v625, %v617
        %v629 = vmul.f32 %v627, %v617
        %v630 = vadd.f32 %v628, 1e-06
        %v631 = vadd.f32 %v629, 1e-06
        %v632 = vrsqrt.pop %v630
        %v633 = vmul.f32 %v632, %v630
        %v634 = vmul.f32 %v633, %v632
        %v635 = vmul.f32 0.5, %v634
        %v636 = vsub.f32 1.5, %v635
        %v637 = vmul.f32 %v632, %v636
        %vm638 = vweird.f32 %v630
        %vm639 = vweird.f32 %v632
        %vm640 = vmor %vm638, %vm639
        %v641 = vsel %vm640, %v632, %v637
        %v642 = vrsqrt.pop %v631
        %v643 = vmul.f32 %v642, %v631
        %v644 = vmul.f32 %v643, %v642
        %v645 = vmul.f32 0.5, %v644
        %v646 = vsub.f32 1.5, %v645
        %v647 = vmul.f32 %v642, %v646
        %vm648 = vweird.f32 %v631
        %vm649 = vweird.f32 %v642
        %vm650 = vmor %vm648, %vm649
        %v651 = vsel %vm650, %v642, %v647
        %v652 = vmul.f32 %v620, %v641
        %v653 = vmul.f32 %v621, %v651
        %v655 = vperm.slane %v605, 0
        %v657 = vmul.f32 %v652, %v655
        %v658 = vmul.f32 %v653, %v655
        %v660 = vperm.slane %v606, 0
        %v662 = vadd.f32 %v657, %v660
        %v663 = vadd.f32 %v658, %v660
        %v664 = vld [vmem:[#allocation7] sm:$0xff]
        %v665 = vld [vmem:[#allocation7 + $0x8] sm:$0xff]
        %v666 = vld [vmem:[#allocation7 + $0x10] sm:$0xff]
        %v667 = vld [vmem:[#allocation7 + $0x18] sm:$0xff]
        %v668 = vld [vmem:[#allocation7 + $0x20] sm:$0xff]
        %v669 = vld [vmem:[#allocation7 + $0x28] sm:$0xff]
        %v670 = vld [vmem:[#allocation7 + $0x30] sm:$0xff]
        %v671 = vld [vmem:[#allocation7 + $0x38] sm:$0xff]
        %v672 = vld [vmem:[#allocation7 + $0x40] sm:$0xff]
        %v673 = vld [vmem:[#allocation7 + $0x48] sm:$0xff]
        %v674 = vld [vmem:[#allocation7 + $0x50] sm:$0xff]
        %v675 = vld [vmem:[#allocation7 + $0x58] sm:$0xff]
        %v676 = vld [vmem:[#allocation7 + $0x60] sm:$0xff]
        %v677 = vld [vmem:[#allocation7 + $0x68] sm:$0xff]
        %v678 = vld [vmem:[#allocation7 + $0x70] sm:$0xff]
        %v679 = vld [vmem:[#allocation7 + $0x78] sm:$0xff]
        %v680 = vld [vmem:[#allocation7 + $0x80] sm:$0xff]
        %v681 = vld [vmem:[#allocation7 + $0x88] sm:$0xff]
        %v682 = vld [vmem:[#allocation7 + $0x90] sm:$0xff]
        %v683 = vld [vmem:[#allocation7 + $0x98] sm:$0xff]
        %v684 = vld [vmem:[#allocation7 + $0xa0] sm:$0xff]
        %v685 = vld [vmem:[#allocation7 + $0xa8] sm:$0xff]
        %v686 = vld [vmem:[#allocation7 + $0xb0] sm:$0xff]
        %v687 = vld [vmem:[#allocation7 + $0xb8] sm:$0xff]
        %v688 = vld [vmem:[#allocation7 + $0xc0] sm:$0xff]
        %v689 = vld [vmem:[#allocation7 + $0xc8] sm:$0xff]
        %v690 = vld [vmem:[#allocation7 + $0xd0] sm:$0xff]
        %v691 = vld [vmem:[#allocation7 + $0xd8] sm:$0xff]
        %v692 = vld [vmem:[#allocation7 + $0xe0] sm:$0xff]
        %v693 = vld [vmem:[#allocation7 + $0xe8] sm:$0xff]
        %v694 = vld [vmem:[#allocation7 + $0xf0] sm:$0xff]
        %v695 = vld [vmem:[#allocation7 + $0xf8] sm:$0xff]
        %v696 = vld [vmem:[#allocation7 + $0x100] sm:$0xff]
        %v697 = vld [vmem:[#allocation7 + $0x108] sm:$0xff]
        %v698 = vld [vmem:[#allocation7 + $0x110] sm:$0xff]
        %v699 = vld [vmem:[#allocation7 + $0x118] sm:$0xff]
        %v700 = vld [vmem:[#allocation7 + $0x120] sm:$0xff]
        %v701 = vld [vmem:[#allocation7 + $0x128] sm:$0xff]
        %v702 = vld [vmem:[#allocation7 + $0x130] sm:$0xff]
        %v703 = vld [vmem:[#allocation7 + $0x138] sm:$0xff]
        %v704 = vld [vmem:[#allocation7 + $0x140] sm:$0xff]
        %v705 = vld [vmem:[#allocation7 + $0x148] sm:$0xff]
        %v706 = vld [vmem:[#allocation7 + $0x150] sm:$0xff]
        %v707 = vld [vmem:[#allocation7 + $0x158] sm:$0xff]
        %v708 = vld [vmem:[#allocation7 + $0x160] sm:$0xff]
        %v709 = vld [vmem:[#allocation7 + $0x168] sm:$0xff]
        %v710 = vld [vmem:[#allocation7 + $0x170] sm:$0xff]
        %v711 = vld [vmem:[#allocation7 + $0x178] sm:$0xff]
        %v712 = vld [vmem:[#allocation8] sm:$0x7]
        %v714 = vperm.slane %v712, 0
        %v715 = vperm.slane %v712, 1
        %v716 = vperm.slane %v712, 2
        %720 = vmatpush.msra.mxu0 %v709
        %721 = vmatpush.msra.mxu0 %v706
        %722 = vmatpush.msra.mxu0 %v703
        %723 = vmatpush.msra.mxu0 %v700
        %724 = vmatpush.msra.mxu0 %v697
        %725 = vmatpush.msra.mxu0 %v694
        %726 = vmatpush.msra.mxu0 %v691
        %727 = vmatpush.msra.mxu0 %v688
        %728 = vmatpush.msra.mxu0 %v685
        %729 = vmatpush.msra.mxu0 %v682
        %730 = vmatpush.msra.mxu0 %v679
        %731 = vmatpush.msra.mxu0 %v676
        %732 = vmatpush.msra.mxu0 %v673
        %733 = vmatpush.msra.mxu0 %v670
        %734 = vmatpush.msra.mxu0 %v667
        %735 = vmatpush.msra.mxu0 %v664
        %736 = vmatmul.f32.gmra.mxu0 %v662
        %v737 = vpop.f32.mrf.mxu0
        %v738 = vadd.f32 %v714, %v737
        %739 = vmatmul.f32.gmra.mxu0 %v663
        %v740 = vpop.f32.mrf.mxu0
        %v741 = vadd.f32 %v714, %v740
        %742 = vdwg.mxu0
        %743 = vmatpush.msra.mxu0 %v710
        %744 = vmatpush.msra.mxu0 %v707
        %745 = vmatpush.msra.mxu0 %v704
        %746 = vmatpush.msra.mxu0 %v701
        %747 = vmatpush.msra.mxu0 %v698
        %748 = vmatpush.msra.mxu0 %v695
        %749 = vmatpush.msra.mxu0 %v692
        %750 = vmatpush.msra.mxu0 %v689
        %751 = vmatpush.msra.mxu0 %v686
        %752 = vmatpush.msra.mxu0 %v683
        %753 = vmatpush.msra.mxu0 %v680
        %754 = vmatpush.msra.mxu0 %v677
        %755 = vmatpush.msra.mxu0 %v674
        %756 = vmatpush.msra.mxu0 %v671
        %757 = vmatpush.msra.mxu0 %v668
        %758 = vmatpush.msra.mxu0 %v665
        %759 = vmatmul.f32.gmra.mxu0 %v662
        %v760 = vpop.f32.mrf.mxu0
        %v761 = vadd.f32 %v715, %v760
        %762 = vmatmul.f32.gmra.mxu0 %v663
        %v763 = vpop.f32.mrf.mxu0
        %v764 = vadd.f32 %v715, %v763
        %765 = vdwg.mxu0
        %766 = vmatpush.msra.mxu0 %v711
        %767 = vmatpush.msra.mxu0 %v708
        %768 = vmatpush.msra.mxu0 %v705
        %769 = vmatpush.msra.mxu0 %v702
        %770 = vmatpush.msra.mxu0 %v699
        %771 = vmatpush.msra.mxu0 %v696
        %772 = vmatpush.msra.mxu0 %v693
        %773 = vmatpush.msra.mxu0 %v690
        %774 = vmatpush.msra.mxu0 %v687
        %775 = vmatpush.msra.mxu0 %v684
        %776 = vmatpush.msra.mxu0 %v681
        %777 = vmatpush.msra.mxu0 %v678
        %778 = vmatpush.msra.mxu0 %v675
        %779 = vmatpush.msra.mxu0 %v672
        %780 = vmatpush.msra.mxu0 %v669
        %781 = vmatpush.msra.mxu0 %v666
        %782 = vmatmul.f32.gmra.mxu0 %v662
        %v783 = vpop.f32.mrf.mxu0
        %v784 = vadd.f32 %v716, %v783
        %785 = vmatmul.f32.gmra.mxu0 %v663
        %v786 = vpop.f32.mrf.mxu0
        %v787 = vadd.f32 %v716, %v786
        %788 = vdwg.mxu0
        %v789 = vmul.f32 %v738, 0.17677669
        %v790 = vmul.f32 %v741, 0.17677669
        %v791 = vld [vmem:[%s528] sm:$0x1]
        %vm792 = vcmp.gt.s32.totalorder %v791, 0
        %v793 = vsel %vm792, -1e+18, 0.0
        %v795 = vperm.slane %v793, 0
        %vm797 = vcmask 261120
        %v799 = vsel %vm797, %v789, 0
        %v802 = vsel %vm797, %v790, 0
        %v805 = vsel %vm797, %v761, 0
        %v808 = vsel %vm797, %v764, 0
        %810 = vmatpush.xpose.msra.mxu0 0.0
        %811 = vmatpush.xpose.msra.mxu0 0.0
        %812 = vmatpush.xpose.msra.mxu0 0.0
        %813 = vmatpush.xpose.msra.mxu0 0.0
        %814 = vmatpush.xpose.msra.mxu0 0.0
        %815 = vmatpush.xpose.msra.mxu0 0.0
        %816 = vmatpush.xpose.msra.mxu0 0.0
        %817 = vmatpush.xpose.msra.mxu0 0.0
        %818 = vmatpush.xpose.msra.mxu0 0.0
        %819 = vmatpush.xpose.msra.mxu0 0.0
        %820 = vmatpush.xpose.msra.mxu0 0.0
        %821 = vmatpush.xpose.msra.mxu0 0.0
        %822 = vmatpush.xpose.msra.mxu0 0.0
        %823 = vmatpush.xpose.msra.mxu0 0.0
        %824 = vmatpush.xpose.msra.mxu0 %v808
        %825 = vmatpush.xpose.msra.mxu0 %v805
        %826 = vmatmul.f32.gmra.mxu0 %v799
        %v827 = vpop.f32.mrf.mxu0
        %v828 = vadd.f32 %v795, %v827
        %829 = vmatmul.f32.gmra.mxu0 %v802
        %v830 = vpop.f32.mrf.mxu0
        %v831 = vadd.f32 %v795, %v830
        %832 = vdwg.mxu0
        %vm833 = vcmask 130048
        %v834 = vsel %vm833, %v828, -inf
        %835 = vmax.xlane.f32.xlu0 %v834
        %v836 = vpop.xlane.xlu0 %835
        %v837 = vsel %vm833, %v831, -inf
        %838 = vmax.xlane.f32.xlu0 %v837
        %v839 = vpop.xlane.xlu0 %838
        %v840 = vsub.f32 %v828, %v836
        %v841 = vsub.f32 %v831, %v839
        %v842 = vmul.f32 %v840, 1.442695
        %v843 = vpow.pop %v842
        %v844 = vmul.f32 %v841, 1.442695
        %v845 = vpow.pop %v844
        %v846 = vsel %vm833, %v843, 0.0
        %847 = vadd.xlane.f32.xlu0 %v846
        %v848 = vpop.xlane.xlu0 %847
        %v849 = vsel %vm833, %v845, 0.0
        %850 = vadd.xlane.f32.xlu0 %v849
        %v851 = vpop.xlane.xlu0 %850
        %v853 = vsel %vm833, %v843, 0
        %v856 = vsel %vm833, %v845, 0
        %858 = vmatpush.msra.mxu0 0.0
        %859 = vmatpush.msra.mxu0 0.0
        %860 = vmatpush.msra.mxu0 0.0
        %861 = vmatpush.msra.mxu0 0.0
        %862 = vmatpush.msra.mxu0 0.0
        %863 = vmatpush.msra.mxu0 0.0
        %864 = vmatpush.msra.mxu0 0.0
        %865 = vmatpush.msra.mxu0 0.0
        %866 = vmatpush.msra.mxu0 0.0
        %867 = vmatpush.msra.mxu0 0.0
        %868 = vmatpush.msra.mxu0 0.0
        %869 = vmatpush.msra.mxu0 0.0
        %870 = vmatpush.msra.mxu0 0.0
        %871 = vmatpush.msra.mxu0 0.0
        %872 = vmatpush.msra.mxu0 %v787
        %873 = vmatpush.msra.mxu0 %v784
        %874 = vmatmul.f32.gmra.mxu0 %v853
        %v875 = vpop.f32.mrf.mxu0
        %v876 = vadd.f32 0.0, %v875
        %877 = vmatmul.f32.gmra.mxu0 %v856
        %v878 = vpop.f32.mrf.mxu0
        %v879 = vadd.f32 0.0, %v878
        %880 = vdwg.mxu0
        %v881 = vrcp.pop %v848
        %v882 = vrcp.pop %v851
        %v883 = vmul.f32 %v876, %v881
        %v884 = vmul.f32 %v879, %v882
        %885 = vrot.lane.b32.xlu0 %v789, 96
        %v886 = vpop.permute.xlu0 %885
        %887 = vrot.lane.b32.xlu0 %v790, 96
        %v888 = vpop.permute.xlu0 %887
        %889 = vrot.lane.b32.xlu0 %v761, 96
        %v890 = vpop.permute.xlu0 %889
        %891 = vrot.lane.b32.xlu0 %v764, 96
        %v892 = vpop.permute.xlu0 %891
        %v893 = vsel %vm797, %v886, 0
        %v895 = vsel %vm797, %v888, 0
        %v897 = vsel %vm797, %v890, 0
        %v899 = vsel %vm797, %v892, 0
        %901 = vmatpush.xpose.msra.mxu0 0.0
        %902 = vmatpush.xpose.msra.mxu0 0.0
        %903 = vmatpush.xpose.msra.mxu0 0.0
        %904 = vmatpush.xpose.msra.mxu0 0.0
        %905 = vmatpush.xpose.msra.mxu0 0.0
        %906 = vmatpush.xpose.msra.mxu0 0.0
        %907 = vmatpush.xpose.msra.mxu0 0.0
        %908 = vmatpush.xpose.msra.mxu0 0.0
        %909 = vmatpush.xpose.msra.mxu0 0.0
        %910 = vmatpush.xpose.msra.mxu0 0.0
        %911 = vmatpush.xpose.msra.mxu0 0.0
        %912 = vmatpush.xpose.msra.mxu0 0.0
        %913 = vmatpush.xpose.msra.mxu0 0.0
        %914 = vmatpush.xpose.msra.mxu0 0.0
        %915 = vmatpush.xpose.msra.mxu0 %v899
        %916 = vmatpush.xpose.msra.mxu0 %v897
        %917 = vmatmul.f32.gmra.mxu0 %v893
        %v918 = vpop.f32.mrf.mxu0
        %v919 = vadd.f32 %v795, %v918
        %920 = vmatmul.f32.gmra.mxu0 %v895
        %v921 = vpop.f32.mrf.mxu0
        %v922 = vadd.f32 %v795, %v921
        %923 = vdwg.mxu0
        %v924 = vsel %vm833, %v919, -inf
        %925 = vmax.xlane.f32.xlu0 %v924
        %v926 = vpop.xlane.xlu0 %925
        %v927 = vsel %vm833, %v922, -inf
        %928 = vmax.xlane.f32.xlu0 %v927
        %v929 = vpop.xlane.xlu0 %928
        %v930 = vsub.f32 %v919, %v926
        %v931 = vsub.f32 %v922, %v929
        %v932 = vmul.f32 %v930, 1.442695
        %v933 = vpow.pop %v932
        %v934 = vmul.f32 %v931, 1.442695
        %v935 = vpow.pop %v934
        %v936 = vsel %vm833, %v933, 0.0
        %937 = vadd.xlane.f32.xlu0 %v936
        %v938 = vpop.xlane.xlu0 %937
        %v939 = vsel %vm833, %v935, 0.0
        %940 = vadd.xlane.f32.xlu0 %v939
        %v941 = vpop.xlane.xlu0 %940
        %944 = vrot.lane.b32.xlu0 %v784, 96
        %v945 = vpop.permute.xlu0 %944
        %946 = vrot.lane.b32.xlu0 %v787, 96
        %v947 = vpop.permute.xlu0 %946
        %v951 = vsel %vm833, %v933, 0
        %v954 = vsel %vm833, %v935, 0
        %956 = vmatpush.msra.mxu0 0.0
        %957 = vmatpush.msra.mxu0 0.0
        %958 = vmatpush.msra.mxu0 0.0
        %959 = vmatpush.msra.mxu0 0.0
        %960 = vmatpush.msra.mxu0 0.0
        %961 = vmatpush.msra.mxu0 0.0
        %962 = vmatpush.msra.mxu0 0.0
        %963 = vmatpush.msra.mxu0 0.0
        %964 = vmatpush.msra.mxu0 0.0
        %965 = vmatpush.msra.mxu0 0.0
        %966 = vmatpush.msra.mxu0 0.0
        %967 = vmatpush.msra.mxu0 0.0
        %968 = vmatpush.msra.mxu0 0.0
        %969 = vmatpush.msra.mxu0 0.0
        %970 = vmatpush.msra.mxu0 %v947
        %971 = vmatpush.msra.mxu0 %v945
        %972 = vmatmul.f32.gmra.mxu0 %v951
        %v973 = vpop.f32.mrf.mxu0
        %v974 = vadd.f32 0.0, %v973
        %975 = vmatmul.f32.gmra.mxu0 %v954
        %v976 = vpop.f32.mrf.mxu0
        %v977 = vadd.f32 0.0, %v976
        %978 = vdwg.mxu0
        %v979 = vrcp.pop %v938
        %v980 = vrcp.pop %v941
        %v981 = vmul.f32 %v974, %v979
        %v982 = vmul.f32 %v977, %v980
        %983 = vrot.lane.b32.xlu0 %v789, 64
        %v984 = vpop.permute.xlu0 %983
        %985 = vrot.lane.b32.xlu0 %v790, 64
        %v986 = vpop.permute.xlu0 %985
        %987 = vrot.lane.b32.xlu0 %v761, 64
        %v988 = vpop.permute.xlu0 %987
        %989 = vrot.lane.b32.xlu0 %v764, 64
        %v990 = vpop.permute.xlu0 %989
        %v991 = vsel %vm797, %v984, 0
        %v993 = vsel %vm797, %v986, 0
        %v995 = vsel %vm797, %v988, 0
        %v997 = vsel %vm797, %v990, 0
        %999 = vmatpush.xpose.msra.mxu0 0.0
        %1000 = vmatpush.xpose.msra.mxu0 0.0
        %1001 = vmatpush.xpose.msra.mxu0 0.0
        %1002 = vmatpush.xpose.msra.mxu0 0.0
        %1003 = vmatpush.xpose.msra.mxu0 0.0
        %1004 = vmatpush.xpose.msra.mxu0 0.0
        %1005 = vmatpush.xpose.msra.mxu0 0.0
        %1006 = vmatpush.xpose.msra.mxu0 0.0
        %1007 = vmatpush.xpose.msra.mxu0 0.0
        %1008 = vmatpush.xpose.msra.mxu0 0.0
        %1009 = vmatpush.xpose.msra.mxu0 0.0
        %1010 = vmatpush.xpose.msra.mxu0 0.0
        %1011 = vmatpush.xpose.msra.mxu0 0.0
        %1012 = vmatpush.xpose.msra.mxu0 0.0
        %1013 = vmatpush.xpose.msra.mxu0 %v997
        %1014 = vmatpush.xpose.msra.mxu0 %v995
        %1015 = vmatmul.f32.gmra.mxu0 %v991
        %v1016 = vpop.f32.mrf.mxu0
        %v1017 = vadd.f32 %v795, %v1016
        %1018 = vmatmul.f32.gmra.mxu0 %v993
        %v1019 = vpop.f32.mrf.mxu0
        %v1020 = vadd.f32 %v795, %v1019
        %1021 = vdwg.mxu0
        %v1022 = vsel %vm833, %v1017, -inf
        %1023 = vmax.xlane.f32.xlu0 %v1022
        %v1024 = vpop.xlane.xlu0 %1023
        %v1025 = vsel %vm833, %v1020, -inf
        %1026 = vmax.xlane.f32.xlu0 %v1025
        %v1027 = vpop.xlane.xlu0 %1026
        %v1028 = vsub.f32 %v1017, %v1024
        %v1029 = vsub.f32 %v1020, %v1027
        %v1030 = vmul.f32 %v1028, 1.442695
        %v1031 = vpow.pop %v1030
        %v1032 = vmul.f32 %v1029, 1.442695
        %v1033 = vpow.pop %v1032
        %v1034 = vsel %vm833, %v1031, 0.0
        %1035 = vadd.xlane.f32.xlu0 %v1034
        %v1036 = vpop.xlane.xlu0 %1035
        %v1037 = vsel %vm833, %v1033, 0.0
        %1038 = vadd.xlane.f32.xlu0 %v1037
        %v1039 = vpop.xlane.xlu0 %1038
        %1040 = vrot.lane.b32.xlu0 %v784, 64
        %v1041 = vpop.permute.xlu0 %1040
        %1042 = vrot.lane.b32.xlu0 %v787, 64
        %v1043 = vpop.permute.xlu0 %1042
        %v1047 = vsel %vm833, %v1031, 0
        %v1050 = vsel %vm833, %v1033, 0
        %1052 = vmatpush.msra.mxu0 0.0
        %1053 = vmatpush.msra.mxu0 0.0
        %1054 = vmatpush.msra.mxu0 0.0
        %1055 = vmatpush.msra.mxu0 0.0
        %1056 = vmatpush.msra.mxu0 0.0
        %1057 = vmatpush.msra.mxu0 0.0
        %1058 = vmatpush.msra.mxu0 0.0
        %1059 = vmatpush.msra.mxu0 0.0
        %1060 = vmatpush.msra.mxu0 0.0
        %1061 = vmatpush.msra.mxu0 0.0
        %1062 = vmatpush.msra.mxu0 0.0
        %1063 = vmatpush.msra.mxu0 0.0
        %1064 = vmatpush.msra.mxu0 0.0
        %1065 = vmatpush.msra.mxu0 0.0
        %1066 = vmatpush.msra.mxu0 %v1043
        %1067 = vmatpush.msra.mxu0 %v1041
        %1068 = vmatmul.f32.gmra.mxu0 %v1047
        %v1069 = vpop.f32.mrf.mxu0
        %v1070 = vadd.f32 0.0, %v1069
        %1071 = vmatmul.f32.gmra.mxu0 %v1050
        %v1072 = vpop.f32.mrf.mxu0
        %v1073 = vadd.f32 0.0, %v1072
        %1074 = vdwg.mxu0
        %v1075 = vrcp.pop %v1036
        %v1076 = vrcp.pop %v1039
        %v1077 = vmul.f32 %v1070, %v1075
        %v1078 = vmul.f32 %v1073, %v1076
        %1079 = vrot.lane.b32.xlu0 %v789, 32
        %v1080 = vpop.permute.xlu0 %1079
        %1081 = vrot.lane.b32.xlu0 %v790, 32
        %v1082 = vpop.permute.xlu0 %1081
        %1083 = vrot.lane.b32.xlu0 %v761, 32
        %v1084 = vpop.permute.xlu0 %1083
        %1085 = vrot.lane.b32.xlu0 %v764, 32
        %v1086 = vpop.permute.xlu0 %1085
        %v1087 = vsel %vm797, %v1080, 0
        %v1089 = vsel %vm797, %v1082, 0
        %v1091 = vsel %vm797, %v1084, 0
        %v1093 = vsel %vm797, %v1086, 0
        %1095 = vmatpush.xpose.msra.mxu0 0.0
        %1096 = vmatpush.xpose.msra.mxu0 0.0
        %1097 = vmatpush.xpose.msra.mxu0 0.0
        %1098 = vmatpush.xpose.msra.mxu0 0.0
        %1099 = vmatpush.xpose.msra.mxu0 0.0
        %1100 = vmatpush.xpose.msra.mxu0 0.0
        %1101 = vmatpush.xpose.msra.mxu0 0.0
        %1102 = vmatpush.xpose.msra.mxu0 0.0
        %1103 = vmatpush.xpose.msra.mxu0 0.0
        %1104 = vmatpush.xpose.msra.mxu0 0.0
        %1105 = vmatpush.xpose.msra.mxu0 0.0
        %1106 = vmatpush.xpose.msra.mxu0 0.0
        %1107 = vmatpush.xpose.msra.mxu0 0.0
        %1108 = vmatpush.xpose.msra.mxu0 0.0
        %1109 = vmatpush.xpose.msra.mxu0 %v1093
        %1110 = vmatpush.xpose.msra.mxu0 %v1091
        %1111 = vmatmul.f32.gmra.mxu0 %v1087
        %v1112 = vpop.f32.mrf.mxu0
        %v1113 = vadd.f32 %v795, %v1112
        %1114 = vmatmul.f32.gmra.mxu0 %v1089
        %v1115 = vpop.f32.mrf.mxu0
        %v1116 = vadd.f32 %v795, %v1115
        %1117 = vdwg.mxu0
        %v1118 = vsel %vm833, %v1113, -inf
        %1119 = vmax.xlane.f32.xlu0 %v1118
        %v1120 = vpop.xlane.xlu0 %1119
        %v1121 = vsel %vm833, %v1116, -inf
        %1122 = vmax.xlane.f32.xlu0 %v1121
        %v1123 = vpop.xlane.xlu0 %1122
        %v1124 = vsub.f32 %v1113, %v1120
        %v1125 = vsub.f32 %v1116, %v1123
        %v1126 = vmul.f32 %v1124, 1.442695
        %v1127 = vpow.pop %v1126
        %v1128 = vmul.f32 %v1125, 1.442695
        %v1129 = vpow.pop %v1128
        %v1130 = vsel %vm833, %v1127, 0.0
        %1131 = vadd.xlane.f32.xlu0 %v1130
        %v1132 = vpop.xlane.xlu0 %1131
        %v1133 = vsel %vm833, %v1129, 0.0
        %1134 = vadd.xlane.f32.xlu0 %v1133
        %v1135 = vpop.xlane.xlu0 %1134
        %1136 = vrot.lane.b32.xlu0 %v784, 32
        %v1137 = vpop.permute.xlu0 %1136
        %1138 = vrot.lane.b32.xlu0 %v787, 32
        %v1139 = vpop.permute.xlu0 %1138
        %v1143 = vsel %vm833, %v1127, 0
        %v1146 = vsel %vm833, %v1129, 0
        %1148 = vmatpush.msra.mxu0 0.0
        %1149 = vmatpush.msra.mxu0 0.0
        %1150 = vmatpush.msra.mxu0 0.0
        %1151 = vmatpush.msra.mxu0 0.0
        %1152 = vmatpush.msra.mxu0 0.0
        %1153 = vmatpush.msra.mxu0 0.0
        %1154 = vmatpush.msra.mxu0 0.0
        %1155 = vmatpush.msra.mxu0 0.0
        %1156 = vmatpush.msra.mxu0 0.0
        %1157 = vmatpush.msra.mxu0 0.0
        %1158 = vmatpush.msra.mxu0 0.0
        %1159 = vmatpush.msra.mxu0 0.0
        %1160 = vmatpush.msra.mxu0 0.0
        %1161 = vmatpush.msra.mxu0 0.0
        %1162 = vmatpush.msra.mxu0 %v1139
        %1163 = vmatpush.msra.mxu0 %v1137
        %1164 = vmatmul.f32.gmra.mxu0 %v1143
        %v1165 = vpop.f32.mrf.mxu0
        %v1166 = vadd.f32 0.0, %v1165
        %1167 = vmatmul.f32.gmra.mxu0 %v1146
        %v1168 = vpop.f32.mrf.mxu0
        %v1169 = vadd.f32 0.0, %v1168
        %1170 = vdwg.mxu0
        %v1171 = vrcp.pop %v1132
        %v1172 = vrcp.pop %v1135
        %v1173 = vmul.f32 %v1166, %v1171
        %v1174 = vmul.f32 %v1169, %v1172
        %1177 = vrot.lane.b32.xlu0 %v981, 32
        %v1178 = vpop.permute.xlu0 %1177
        %1179 = vrot.lane.b32.xlu0 %v982, 32
        %v1180 = vpop.permute.xlu0 %1179
        %1185 = vrot.lane.b32.xlu0 %v1077, 64
        %v1186 = vpop.permute.xlu0 %1185
        %1187 = vrot.lane.b32.xlu0 %v1078, 64
        %v1188 = vpop.permute.xlu0 %1187
        %1193 = vrot.lane.b32.xlu0 %v1173, 96
        %v1194 = vpop.permute.xlu0 %1193
        %1195 = vrot.lane.b32.xlu0 %v1174, 96
        %v1196 = vpop.permute.xlu0 %1195
        %v1199 = vsel %vm797, %v883, %v1178
        %v1200 = vsel %vm797, %v884, %v1180
        %vm1201 = vcmask 523264
        %v1202 = vsel %vm1201, %v1199, %v1186
        %v1203 = vsel %vm1201, %v1200, %v1188
        %vm1204 = vcmask 785408
        %v1205 = vsel %vm1204, %v1202, %v1194
        %v1206 = vsel %vm1204, %v1203, %v1196
        %v1207 = vld [vmem:[#allocation10] sm:$0xff]
        %v1208 = vld [vmem:[#allocation10 + $0x8] sm:$0xff]
        %v1209 = vld [vmem:[#allocation10 + $0x10] sm:$0xff]
        %v1210 = vld [vmem:[#allocation10 + $0x18] sm:$0xff]
        %v1211 = vld [vmem:[#allocation10 + $0x20] sm:$0xff]
        %v1212 = vld [vmem:[#allocation10 + $0x28] sm:$0xff]
        %v1213 = vld [vmem:[#allocation10 + $0x30] sm:$0xff]
        %v1214 = vld [vmem:[#allocation10 + $0x38] sm:$0xff]
        %v1215 = vld [vmem:[#allocation10 + $0x40] sm:$0xff]
        %v1216 = vld [vmem:[#allocation10 + $0x48] sm:$0xff]
        %v1217 = vld [vmem:[#allocation10 + $0x50] sm:$0xff]
        %v1218 = vld [vmem:[#allocation10 + $0x58] sm:$0xff]
        %v1219 = vld [vmem:[#allocation10 + $0x60] sm:$0xff]
        %v1220 = vld [vmem:[#allocation10 + $0x68] sm:$0xff]
        %v1221 = vld [vmem:[#allocation10 + $0x70] sm:$0xff]
        %v1222 = vld [vmem:[#allocation10 + $0x78] sm:$0xff]
        %v1223 = vld [vmem:[%s5] sm:$0x1]
        %v1225 = vperm.slane %v1223, 0
        %1227 = vmatpush.msra.mxu0 %v1222
        %1228 = vmatpush.msra.mxu0 %v1221
        %1229 = vmatpush.msra.mxu0 %v1220
        %1230 = vmatpush.msra.mxu0 %v1219
        %1231 = vmatpush.msra.mxu0 %v1218
        %1232 = vmatpush.msra.mxu0 %v1217
        %1233 = vmatpush.msra.mxu0 %v1216
        %1234 = vmatpush.msra.mxu0 %v1215
        %1235 = vmatpush.msra.mxu0 %v1214
        %1236 = vmatpush.msra.mxu0 %v1213
        %1237 = vmatpush.msra.mxu0 %v1212
        %1238 = vmatpush.msra.mxu0 %v1211
        %1239 = vmatpush.msra.mxu0 %v1210
        %1240 = vmatpush.msra.mxu0 %v1209
        %1241 = vmatpush.msra.mxu0 %v1208
        %1242 = vmatpush.msra.mxu0 %v1207
        %1243 = vmatmul.f32.gmra.mxu0 %v1205
        %v1244 = vpop.f32.mrf.mxu0
        %v1245 = vadd.f32 %v1225, %v1244
        %1246 = vmatmul.f32.gmra.mxu0 %v1206
        %v1247 = vpop.f32.mrf.mxu0
        %v1248 = vadd.f32 %v1225, %v1247
        %1249 = vdwg.mxu0
        %v1250 = vadd.f32 %v1245, %v603
        %v1251 = vadd.f32 %v1248, %v604
        %v1252 = vld [vmem:[%s8] sm:$0x1]
        %v1253 = vld [vmem:[%s9] sm:$0x1]
        %1254 = vadd.xlane.f32.xlu0 %v1250
        %v1255 = vpop.xlane.xlu0 %1254
        %1256 = vadd.xlane.f32.xlu0 %v1251
        %v1257 = vpop.xlane.xlu0 %1256
        %v1258 = vmul.f32 %v1255, %v617
        %v1259 = vmul.f32 %v1257, %v617
        %v1260 = vsub.f32 %v1250, %v1258
        %v1261 = vsub.f32 %v1251, %v1259
        %v1262 = vmul.f32 %v1260, %v1260
        %v1263 = vmul.f32 %v1261, %v1261
        %1264 = vadd.xlane.f32.xlu0 %v1262
        %v1265 = vpop.xlane.xlu0 %1264
        %1266 = vadd.xlane.f32.xlu0 %v1263
        %v1267 = vpop.xlane.xlu0 %1266
        %v1268 = vmul.f32 %v1265, %v617
        %v1269 = vmul.f32 %v1267, %v617
        %v1270 = vadd.f32 %v1268, 1e-06
        %v1271 = vadd.f32 %v1269, 1e-06
        %v1272 = vrsqrt.pop %v1270
        %v1273 = vmul.f32 %v1272, %v1270
        %v1274 = vmul.f32 %v1273, %v1272
        %v1275 = vmul.f32 0.5, %v1274
        %v1276 = vsub.f32 1.5, %v1275
        %v1277 = vmul.f32 %v1272, %v1276
        %vm1278 = vweird.f32 %v1270
        %vm1279 = vweird.f32 %v1272
        %vm1280 = vmor %vm1278, %vm1279
        %v1281 = vsel %vm1280, %v1272, %v1277
        %v1282 = vrsqrt.pop %v1271
        %v1283 = vmul.f32 %v1282, %v1271
        %v1284 = vmul.f32 %v1283, %v1282
        %v1285 = vmul.f32 0.5, %v1284
        %v1286 = vsub.f32 1.5, %v1285
        %v1287 = vmul.f32 %v1282, %v1286
        %vm1288 = vweird.f32 %v1271
        %vm1289 = vweird.f32 %v1282
        %vm1290 = vmor %vm1288, %vm1289
        %v1291 = vsel %vm1290, %v1282, %v1287
        %v1292 = vmul.f32 %v1260, %v1281
        %v1293 = vmul.f32 %v1261, %v1291
        %v1295 = vperm.slane %v1252, 0
        %v1297 = vmul.f32 %v1292, %v1295
        %v1298 = vmul.f32 %v1293, %v1295
        %v1300 = vperm.slane %v1253, 0
        %v1302 = vadd.f32 %v1297, %v1300
        %v1303 = vadd.f32 %v1298, %v1300
        %v1304 = vld [vmem:[#allocation11] sm:$0xff]
        %v1305 = vld [vmem:[#allocation11 + $0x8] sm:$0xff]
        %v1306 = vld [vmem:[#allocation11 + $0x10] sm:$0xff]
        %v1307 = vld [vmem:[#allocation11 + $0x18] sm:$0xff]
        %v1308 = vld [vmem:[#allocation11 + $0x20] sm:$0xff]
        %v1309 = vld [vmem:[#allocation11 + $0x28] sm:$0xff]
        %v1310 = vld [vmem:[#allocation11 + $0x30] sm:$0xff]
        %v1311 = vld [vmem:[#allocation11 + $0x38] sm:$0xff]
        %v1312 = vld [vmem:[#allocation11 + $0x40] sm:$0xff]
        %v1313 = vld [vmem:[#allocation11 + $0x48] sm:$0xff]
        %v1314 = vld [vmem:[#allocation11 + $0x50] sm:$0xff]
        %v1315 = vld [vmem:[#allocation11 + $0x58] sm:$0xff]
        %v1316 = vld [vmem:[#allocation11 + $0x60] sm:$0xff]
        %v1317 = vld [vmem:[#allocation11 + $0x68] sm:$0xff]
        %v1318 = vld [vmem:[#allocation11 + $0x70] sm:$0xff]
        %v1319 = vld [vmem:[#allocation11 + $0x78] sm:$0xff]
        %v1320 = vld [vmem:[#allocation11 + $0x80] sm:$0xff]
        %v1321 = vld [vmem:[#allocation11 + $0x88] sm:$0xff]
        %v1322 = vld [vmem:[#allocation11 + $0x90] sm:$0xff]
        %v1323 = vld [vmem:[#allocation11 + $0x98] sm:$0xff]
        %v1324 = vld [vmem:[#allocation11 + $0xa0] sm:$0xff]
        %v1325 = vld [vmem:[#allocation11 + $0xa8] sm:$0xff]
        %v1326 = vld [vmem:[#allocation11 + $0xb0] sm:$0xff]
        %v1327 = vld [vmem:[#allocation11 + $0xb8] sm:$0xff]
        %v1328 = vld [vmem:[#allocation11 + $0xc0] sm:$0xff]
        %v1329 = vld [vmem:[#allocation11 + $0xc8] sm:$0xff]
        %v1330 = vld [vmem:[#allocation11 + $0xd0] sm:$0xff]
        %v1331 = vld [vmem:[#allocation11 + $0xd8] sm:$0xff]
        %v1332 = vld [vmem:[#allocation11 + $0xe0] sm:$0xff]
        %v1333 = vld [vmem:[#allocation11 + $0xe8] sm:$0xff]
        %v1334 = vld [vmem:[#allocation11 + $0xf0] sm:$0xff]
        %v1335 = vld [vmem:[#allocation11 + $0xf8] sm:$0xff]
        %v1336 = vld [vmem:[%s11] sm:$0x3]
        %v1338 = vperm.slane %v1336, 0
        %v1339 = vperm.slane %v1336, 1
        %1342 = vmatpush.msra.mxu0 %v1334
        %1343 = vmatpush.msra.mxu0 %v1332
        %1344 = vmatpush.msra.mxu0 %v1330
        %1345 = vmatpush.msra.mxu0 %v1328
        %1346 = vmatpush.msra.mxu0 %v1326
        %1347 = vmatpush.msra.mxu0 %v1324
        %1348 = vmatpush.msra.mxu0 %v1322
        %1349 = vmatpush.msra.mxu0 %v1320
        %1350 = vmatpush.msra.mxu0 %v1318
        %1351 = vmatpush.msra.mxu0 %v1316
        %1352 = vmatpush.msra.mxu0 %v1314
        %1353 = vmatpush.msra.mxu0 %v1312
        %1354 = vmatpush.msra.mxu0 %v1310
        %1355 = vmatpush.msra.mxu0 %v1308
        %1356 = vmatpush.msra.mxu0 %v1306
        %1357 = vmatpush.msra.mxu0 %v1304
        %1358 = vmatmul.f32.gmra.mxu0 %v1302
        %v1359 = vpop.f32.mrf.mxu0
        %v1360 = vadd.f32 %v1338, %v1359
        %1361 = vmatmul.f32.gmra.mxu0 %v1303
        %v1362 = vpop.f32.mrf.mxu0
        %v1363 = vadd.f32 %v1338, %v1362
        %1364 = vdwg.mxu0
        %1365 = vmatpush.msra.mxu0 %v1335
        %1366 = vmatpush.msra.mxu0 %v1333
        %1367 = vmatpush.msra.mxu0 %v1331
        %1368 = vmatpush.msra.mxu0 %v1329
        %1369 = vmatpush.msra.mxu0 %v1327
        %1370 = vmatpush.msra.mxu0 %v1325
        %1371 = vmatpush.msra.mxu0 %v1323
        %1372 = vmatpush.msra.mxu0 %v1321
        %1373 = vmatpush.msra.mxu0 %v1319
        %1374 = vmatpush.msra.mxu0 %v1317
        %1375 = vmatpush.msra.mxu0 %v1315
        %1376 = vmatpush.msra.mxu0 %v1313
        %1377 = vmatpush.msra.mxu0 %v1311
        %1378 = vmatpush.msra.mxu0 %v1309
        %1379 = vmatpush.msra.mxu0 %v1307
        %1380 = vmatpush.msra.mxu0 %v1305
        %1381 = vmatmul.f32.gmra.mxu0 %v1302
        %v1382 = vpop.f32.mrf.mxu0
        %v1383 = vadd.f32 %v1339, %v1382
        %1384 = vmatmul.f32.gmra.mxu0 %v1303
        %v1385 = vpop.f32.mrf.mxu0
        %v1386 = vadd.f32 %v1339, %v1385
        %1387 = vdwg.mxu0
        %v1388 = vmax.f32 %v1360, 0.0
        %v1389 = vmax.f32 %v1383, 0.0
        %v1390 = vmax.f32 %v1363, 0.0
        %v1391 = vmax.f32 %v1386, 0.0
        %v1392 = vld [vmem:[#allocation13] sm:$0xff]
        %v1393 = vld [vmem:[#allocation13 + $0x8] sm:$0xff]
        %v1394 = vld [vmem:[#allocation13 + $0x10] sm:$0xff]
        %v1395 = vld [vmem:[#allocation13 + $0x18] sm:$0xff]
        %v1396 = vld [vmem:[#allocation13 + $0x20] sm:$0xff]
        %v1397 = vld [vmem:[#allocation13 + $0x28] sm:$0xff]
        %v1398 = vld [vmem:[#allocation13 + $0x30] sm:$0xff]
        %v1399 = vld [vmem:[#allocation13 + $0x38] sm:$0xff]
        %v1400 = vld [vmem:[#allocation13 + $0x40] sm:$0xff]
        %v1401 = vld [vmem:[#allocation13 + $0x48] sm:$0xff]
        %v1402 = vld [vmem:[#allocation13 + $0x50] sm:$0xff]
        %v1403 = vld [vmem:[#allocation13 + $0x58] sm:$0xff]
        %v1404 = vld [vmem:[#allocation13 + $0x60] sm:$0xff]
        %v1405 = vld [vmem:[#allocation13 + $0x68] sm:$0xff]
        %v1406 = vld [vmem:[#allocation13 + $0x70] sm:$0xff]
        %v1407 = vld [vmem:[#allocation13 + $0x78] sm:$0xff]
        %v1408 = vld [vmem:[#allocation13 + $0x80] sm:$0xff]
        %v1409 = vld [vmem:[#allocation13 + $0x88] sm:$0xff]
        %v1410 = vld [vmem:[#allocation13 + $0x90] sm:$0xff]
        %v1411 = vld [vmem:[#allocation13 + $0x98] sm:$0xff]
        %v1412 = vld [vmem:[#allocation13 + $0xa0] sm:$0xff]
        %v1413 = vld [vmem:[#allocation13 + $0xa8] sm:$0xff]
        %v1414 = vld [vmem:[#allocation13 + $0xb0] sm:$0xff]
        %v1415 = vld [vmem:[#allocation13 + $0xb8] sm:$0xff]
        %v1416 = vld [vmem:[#allocation13 + $0xc0] sm:$0xff]
        %v1417 = vld [vmem:[#allocation13 + $0xc8] sm:$0xff]
        %v1418 = vld [vmem:[#allocation13 + $0xd0] sm:$0xff]
        %v1419 = vld [vmem:[#allocation13 + $0xd8] sm:$0xff]
        %v1420 = vld [vmem:[#allocation13 + $0xe0] sm:$0xff]
        %v1421 = vld [vmem:[#allocation13 + $0xe8] sm:$0xff]
        %v1422 = vld [vmem:[#allocation13 + $0xf0] sm:$0xff]
        %v1423 = vld [vmem:[#allocation13 + $0xf8] sm:$0xff]
        %v1424 = vld [vmem:[%s13] sm:$0x1]
        %v1426 = vperm.slane %v1424, 0
        %1428 = vmatpush.msra.mxu0 %v1407
        %1429 = vmatpush.msra.mxu0 %v1406
        %1430 = vmatpush.msra.mxu0 %v1405
        %1431 = vmatpush.msra.mxu0 %v1404
        %1432 = vmatpush.msra.mxu0 %v1403
        %1433 = vmatpush.msra.mxu0 %v1402
        %1434 = vmatpush.msra.mxu0 %v1401
        %1435 = vmatpush.msra.mxu0 %v1400
        %1436 = vmatpush.msra.mxu0 %v1399
        %1437 = vmatpush.msra.mxu0 %v1398
        %1438 = vmatpush.msra.mxu0 %v1397
        %1439 = vmatpush.msra.mxu0 %v1396
        %1440 = vmatpush.msra.mxu0 %v1395
        %1441 = vmatpush.msra.mxu0 %v1394
        %1442 = vmatpush.msra.mxu0 %v1393
        %1443 = vmatpush.msra.mxu0 %v1392
        %1444 = vmatmul.f32.gmra.mxu0 %v1388
        %v1445 = vpop.f32.mrf.mxu0
        %v1446 = vadd.f32 %v1426, %v1445
        %1447 = vmatmul.f32.gmra.mxu0 %v1390
        %v1448 = vpop.f32.mrf.mxu0
        %v1449 = vadd.f32 %v1426, %v1448
        %1450 = vdwg.mxu0
        %1451 = vmatpush.msra.mxu0 %v1423
        %1452 = vmatpush.msra.mxu0 %v1422
        %1453 = vmatpush.msra.mxu0 %v1421
        %1454 = vmatpush.msra.mxu0 %v1420
        %1455 = vmatpush.msra.mxu0 %v1419
        %1456 = vmatpush.msra.mxu0 %v1418
        %1457 = vmatpush.msra.mxu0 %v1417
        %1458 = vmatpush.msra.mxu0 %v1416
        %1459 = vmatpush.msra.mxu0 %v1415
        %1460 = vmatpush.msra.mxu0 %v1414
        %1461 = vmatpush.msra.mxu0 %v1413
        %1462 = vmatpush.msra.mxu0 %v1412
        %1463 = vmatpush.msra.mxu0 %v1411
        %1464 = vmatpush.msra.mxu0 %v1410
        %1465 = vmatpush.msra.mxu0 %v1409
        %1466 = vmatpush.msra.mxu0 %v1408
        %1467 = vmatmul.f32.gmra.mxu0 %v1389
        %v1468 = vpop.f32.mrf.mxu0
        %v1469 = vadd.f32 %v1446, %v1468
        %1470 = vmatmul.f32.gmra.mxu0 %v1391
        %v1471 = vpop.f32.mrf.mxu0
        %v1472 = vadd.f32 %v1449, %v1471
        %1473 = vdwg.mxu0
        %v1474 = vadd.f32 %v1469, %v1250
        %v1475 = vadd.f32 %v1472, %v1251
        %1476 = vst [vmem:[%s602] sm:$0xff] %v1474
        %1477 = vst [vmem:[%s602 + $0x8] sm:$0xff] %v1475
        %s1478 = sand.u32 %s348, 1
        %s1479 = scalar_lea.sflag [#allocation4], %s1478
        %s1480 = sand.u32 %s348, 1
        %s1481 = smul.addr %s1480, 16
        %s1482 = scalar_lea.vmem [#allocation14], %s1481
        // Predicated region
        $region105: #{tpu_custom_call.1} parent=75 // pred_check
          %p1483 = pneg %p358
        $region106: #{tpu_custom_call.1} parent=75 // pred_check_branch
          %1485 = sbr.rel (%p1483) target = $region108
        $region107: #{tpu_custom_call.1} parent=75 // pred_region
          %1487 = vsyncadd %s1479, 0
          %s1488 = smul.addr %s36, 2
          %s1489 = smul.addr %s1488, 8
          %s1490 = scalar_lea.hbm %s14, %s1489
          %s1491 = sshll.u32 %s1482, 4
          %s1492 = int_to_ptr.vmem [resolvable:$true] %s1491
          %s1493 = sshll.u32 %s1490, 4
          %s1494 = int_to_ptr.hbm [resolvable:$true] %s1493
          %1499 = dma.vmem_to_hbm [thread:$0]  %s1492, 256, %s1494, %s1479, 128, 128, 8
        $region108: #{tpu_custom_call.1} parent=75 // pred_fallthru
          _
      $region76: #{tpu_custom_call.1} parent=5 // pred_fallthru
        _
      %p1500 = scmp.le.s32.totalorder 2, %s31
      // Predicated region
      $region109: #{tpu_custom_call.1} parent=5 // pred_check
        %p1501 = pneg %p1500
      $region110: #{tpu_custom_call.1} parent=5 // pred_check_branch
        %1503 = sbr.rel (%p1501) target = $region112
      $region111: #{tpu_custom_call.1} parent=5 // pred_region
        %s1504 = ssub.s32 %s31, 2
        // Predicated region
        $region113: #{tpu_custom_call.1} parent=111 // pred_check
          %p1505 = pneg %p364
        $region114: #{tpu_custom_call.1} parent=111 // pred_check_branch
          %1507 = sbr.rel (%p1505) target = $region116
        $region115: #{tpu_custom_call.1} parent=111 // pred_region
          %s1508 = sand.u32 %s349, 1
          %s1509 = scalar_lea.sflag [#allocation4], %s1508
          %s1510 = sand.u32 %s349, 1
          %s1511 = smul.addr %s1510, 16
          %s1512 = scalar_lea.vmem [#allocation14], %s1511
          %1514 = dma.done %s1509, 256
        $region116: #{tpu_custom_call.1} parent=111 // pred_fallthru
          _
      $region112: #{tpu_custom_call.1} parent=5 // pred_fallthru
        _
    $region6: #{tpu_custom_call.1} parent=1 // loop_footer
      %s35 = sadd.s32 1, %s31
    $region7: #{tpu_custom_call.1} parent=1 // loop_footer_branch
      %30 = sbr.rel target = $region3
    $region8: #{tpu_custom_call.1} parent=1 // loop_exit
      _
    %1515 = vsyncpa [#allocation3], 1
    %s1516 = scalar_lea.sflag [#allocation3], 1
    %1517 = vsyncpa %s1516, 1
    %1518 = vsyncpa [#allocation6], 1
    %s1519 = scalar_lea.sflag [#allocation6], 1
    %1520 = vsyncpa %s1519, 1
    %1521 = vsyncpa [#allocation9], 1
    %1522 = vsyncpa [#allocation12], 1
    %1523 = vsyncpa [#allocation4], 1
    %s1524 = scalar_lea.sflag [#allocation4], 1
    %1525 = vsyncpa %s1524, 1

</llo_original>
